<compile_context>
chip_gen: v7x
topology: tpu7x:2x2x1
jax: 0.10.0
libtpu: 0.0.40
codegen_flags: <defaults>
</compile_context>

<pallas_src>
import jax
import jax.numpy as jnp
from jax import lax
from jax.experimental import pallas as pl
from jax.experimental.pallas import tpu as pltpu

HIDDEN = 768


def dual_head_kernel(x_ref, w1_ref, b1_ref, w2t_ref, b2_ref, out_ref):
    # Layer 1 for this head: x[B,H](bf16) @ w1[H,H](bf16) -> f32, + bias, ReLU.
    h = jnp.dot(x_ref[...], w1_ref[0], preferred_element_type=jnp.float32)
    h = jnp.maximum(h + b1_ref[0], 0.0)                    # [B, H] f32
    # Dropout(p=0.1) is identity in eval mode.
    # Layer 2: contract h[B,H] with lane-dense w2t[n_pad,H] along H (NT matmul),
    # bf16 operands, f32 accumulation.
    out = lax.dot_general(
        h.astype(jnp.bfloat16), w2t_ref[0],
        dimension_numbers=(((1,), (1,)), ((), ())),
        preferred_element_type=jnp.float32)                # [B, n_pad] f32
    out_ref[0] = (out + b2_ref[0]).astype(out_ref.dtype)


def dual_model_heads(x, params):
    """x: [B, 768] pooled output. params: per-head weights stored as [in, out]."""
    B, H = x.shape
    assert H == HIDDEN
    nc = params["w2c"].shape[1]
    nr = params["w2r"].shape[1]            # == 2
    n_pad = max(nc, nr)

    # ---- host-side packing (tiny; amortized under jit) ------------------------
    x_bf16 = x.astype(jnp.bfloat16)

    # Layer 1: both heads stacked on a leading axis, bf16 (dominant HBM bytes).
    w1 = jnp.stack([params["w1c"], params["w1r"]], axis=0).astype(jnp.bfloat16)   # [2, H, H]
    b1 = jnp.stack([params["b1c"], params["b1r"]], axis=0)                        # [2, 1, H] f32

    # Layer 2: transposed (long H dim last -> lane-dense), zero-padded to a common
    # output width, bf16.
    w2c_t = jnp.zeros((n_pad, H), jnp.float32).at[:nc].set(params["w2c"].T)
    w2r_t = jnp.zeros((n_pad, H), jnp.float32).at[:nr].set(params["w2r"].T)
    w2t = jnp.stack([w2c_t, w2r_t], axis=0).astype(jnp.bfloat16)                  # [2, n_pad, H]
    b2c = jnp.zeros((1, n_pad), jnp.float32).at[:, :nc].set(params["b2c"])
    b2r = jnp.zeros((1, n_pad), jnp.float32).at[:, :nr].set(params["b2r"])
    b2 = jnp.stack([b2c, b2r], axis=0)                                            # [2, 1, n_pad] f32

    flops = 2 * (2 * B * H * H) + 2 * (2 * B * H * n_pad)
    bytes_accessed = (x_bf16.size * 2 + w1.size * 2 + w2t.size * 2
                      + b1.size * 4 + b2.size * 4 + 2 * B * n_pad * 4)

    out = pl.pallas_call(
        dual_head_kernel,
        out_shape=jax.ShapeDtypeStruct((2, B, n_pad), jnp.float32),
        grid=(2,),                                          # one step per head
        in_specs=[
            pl.BlockSpec((B, H), lambda h: (0, 0)),         # x   : resident (~3 KB)
            pl.BlockSpec((1, H, H), lambda h: (h, 0, 0)),   # w1  : per-head, streamed bf16
            pl.BlockSpec((1, 1, H), lambda h: (h, 0, 0)),   # b1  : per-head
            pl.BlockSpec((1, n_pad, H), lambda h: (h, 0, 0)),  # w2t: per-head, lane-dense bf16
            pl.BlockSpec((1, 1, n_pad), lambda h: (h, 0, 0)),  # b2 : per-head
        ],
        out_specs=pl.BlockSpec((1, B, n_pad), lambda h: (h, 0, 0)),
        compiler_params=pltpu.CompilerParams(
            # Heads are independent (distinct output blocks) -> safe to shard
            # across v7x's two TensorCores; sequential no-op on v5e/v6e.
            dimension_semantics=("parallel",),
        ),
        cost_estimate=pl.CostEstimate(flops=flops, transcendentals=0,
                                      bytes_accessed=bytes_accessed),
    )(x_bf16, w1, b1, w2t, b2)

    return out[0, :, :nc], out[1, :, :nr]


def init_params(key, hidden=HIDDEN, num_classes=4):
    ks = jax.random.split(key, 8)
    scale = 1.0 / jnp.sqrt(hidden)
    return {
        # stored as [in, out] (transpose of torch Linear weight)
        "w1c": jax.random.uniform(ks[0], (hidden, hidden), jnp.float32, -scale, scale),
        "b1c": jax.random.uniform(ks[1], (1, hidden), jnp.float32, -scale, scale),
        "w2c": jax.random.uniform(ks[2], (hidden, num_classes), jnp.float32, -scale, scale),
        "b2c": jax.random.uniform(ks[3], (1, num_classes), jnp.float32, -scale, scale),
        "w1r": jax.random.uniform(ks[4], (hidden, hidden), jnp.float32, -scale, scale),
        "b1r": jax.random.uniform(ks[5], (1, hidden), jnp.float32, -scale, scale),
        "w2r": jax.random.uniform(ks[6], (hidden, 2), jnp.float32, -scale, scale),
        "b2r": jax.random.uniform(ks[7], (1, 2), jnp.float32, -scale, scale),
    }


def reference(x, p):
    """Pure-JAX reference using the same bf16-rounded matmul operands as the kernel."""
    bf = lambda a: a.astype(jnp.bfloat16).astype(jnp.float32)
    xf = bf(x)
    hc = jnp.maximum(xf @ bf(p["w1c"]) + p["b1c"], 0.0)
    hr = jnp.maximum(xf @ bf(p["w1r"]) + p["b1r"], 0.0)
    cls = bf(hc) @ bf(p["w2c"]) + p["b2c"]
    reg = bf(hr) @ bf(p["w2r"]) + p["b2r"]
    return cls, reg


if __name__ == "__main__":
    key = jax.random.PRNGKey(0)
    k_x, k_p = jax.random.split(key)

    B, NUM_CLASSES = 2, 4
    # Simulated base_model pooler_output (the HF transformer itself is out of scope).
    x = jax.random.normal(k_x, (B, HIDDEN), dtype=jnp.float32)
    params = init_params(k_p, hidden=HIDDEN, num_classes=NUM_CLASSES)

    cls_out, reg_out = dual_model_heads(x, params)
    cls_out, reg_out = jax.block_until_ready((cls_out, reg_out))

    cls_ref, reg_ref = reference(x, params)
    assert cls_out.shape == (B, NUM_CLASSES)
    assert reg_out.shape == (B, 2)
    assert jnp.allclose(cls_out, cls_ref, atol=2e-2, rtol=2e-2)
    assert jnp.allclose(reg_out, reg_ref, atol=2e-2, rtol=2e-2)

    print("KERNEL_OK")
</pallas_src>

<mosaic_0001>
module attributes {stable_mosaic.version = 11 : i64} {
  func.func @dual_head_kernel(%arg0: i32, %arg1: memref<2x768xbf16, #tpu.memory_space<vmem>>, %arg2: memref<1x768x768xbf16, #tpu.memory_space<vmem>>, %arg3: memref<1x1x768xf32, #tpu.memory_space<vmem>>, %arg4: memref<1x4x768xbf16, #tpu.memory_space<vmem>>, %arg5: memref<1x1x4xf32, #tpu.memory_space<vmem>>, %arg6: memref<1x2x4xf32, #tpu.memory_space<vmem>>) attributes {dimension_semantics = [#tpu.dimension_semantics<parallel>], iteration_bounds = array<i64: 2>, scalar_prefetch = 0 : i64, scratch_operands = 0 : i64, tpu.core_type = #tpu.core_type<tc>, window_params = [{pipeline_mode = #tpu.pipeline_mode<synchronous>, transform_indices = @transform_0, window_bounds = array<i64: 2, 768>}, {transform_indices = @transform_1, window_bounds = array<i64: 1, 768, 768>}, {transform_indices = @transform_2, window_bounds = array<i64: 1, 1, 768>}, {transform_indices = @transform_3, window_bounds = array<i64: 1, 4, 768>}, {transform_indices = @transform_4, window_bounds = array<i64: 1, 1, 4>}, {transform_indices = @transform_5, window_bounds = array<i64: 1, 2, 4>}]} {
    %c0 = arith.constant 0 : index
    %c0_0 = arith.constant 0 : index
    %0 = vector.load %arg1[%c0, %c0_0] : memref<2x768xbf16, #tpu.memory_space<vmem>>, vector<2x768xbf16>
    %c0_1 = arith.constant 0 : index
    %c0_2 = arith.constant 0 : index
    %c0_3 = arith.constant 0 : index
    %1 = vector.load %arg2[%c0_1, %c0_2, %c0_3] : memref<1x768x768xbf16, #tpu.memory_space<vmem>>, vector<1x768x768xbf16>
    %2 = vector.shape_cast %1 : vector<1x768x768xbf16> to vector<768x768xbf16>
    %cst = arith.constant dense<0.000000e+00> : vector<2x768xf32>
    %3 = tpu.matmul %0, %2, %cst {dimension_numbers = #tpu.dot_dimension_numbers<[1], [0], [0], [1], [0, 0, 1, 1], [], []>} : vector<2x768xbf16>, vector<768x768xbf16>, vector<2x768xf32> -> vector<2x768xf32>
    %c0_4 = arith.constant 0 : index
    %c0_5 = arith.constant 0 : index
    %c0_6 = arith.constant 0 : index
    %4 = vector.load %arg3[%c0_4, %c0_5, %c0_6] : memref<1x1x768xf32, #tpu.memory_space<vmem>>, vector<1x1x768xf32>
    %5 = vector.shape_cast %4 : vector<1x1x768xf32> to vector<1x768xf32>
    %6 = vector.broadcast %5 : vector<1x768xf32> to vector<2x768xf32>
    %7 = arith.addf %3, %6 : vector<2x768xf32>
    %cst_7 = arith.constant 0.000000e+00 : f32
    %8 = vector.broadcast %cst_7 : f32 to vector<2x768xf32>
    %9 = arith.maximumf %7, %8 : vector<2x768xf32>
    %10 = arith.truncf %9 : vector<2x768xf32> to vector<2x768xbf16>
    %c0_8 = arith.constant 0 : index
    %c0_9 = arith.constant 0 : index
    %c0_10 = arith.constant 0 : index
    %11 = vector.load %arg4[%c0_8, %c0_9, %c0_10] : memref<1x4x768xbf16, #tpu.memory_space<vmem>>, vector<1x4x768xbf16>
    %12 = vector.shape_cast %11 : vector<1x4x768xbf16> to vector<4x768xbf16>
    %cst_11 = arith.constant dense<0.000000e+00> : vector<2x4xf32>
    %13 = tpu.matmul %10, %12, %cst_11 {dimension_numbers = #tpu.dot_dimension_numbers<[1], [1], [0], [0], [0, 0, 1, 0], [], []>} : vector<2x768xbf16>, vector<4x768xbf16>, vector<2x4xf32> -> vector<2x4xf32>
    %c0_12 = arith.constant 0 : index
    %c0_13 = arith.constant 0 : index
    %c0_14 = arith.constant 0 : index
    %14 = vector.load %arg5[%c0_12, %c0_13, %c0_14] : memref<1x1x4xf32, #tpu.memory_space<vmem>>, vector<1x1x4xf32>
    %15 = vector.shape_cast %14 : vector<1x1x4xf32> to vector<1x4xf32>
    %16 = vector.broadcast %15 : vector<1x4xf32> to vector<2x4xf32>
    %17 = arith.addf %13, %16 : vector<2x4xf32>
    %c0_15 = arith.constant 0 : index
    %c0_16 = arith.constant 0 : index
    %c0_17 = arith.constant 0 : index
    %18 = vector.load %arg6[%c0_15, %c0_16, %c0_17] : memref<1x2x4xf32, #tpu.memory_space<vmem>>, vector<1x2x4xf32>
    %19 = vector.shape_cast %18 : vector<1x2x4xf32> to vector<2x4xf32>
    %20 = vector.shape_cast %17 : vector<2x4xf32> to vector<1x2x4xf32>
    tpu.vector_store %arg6[%c0_15, %c0_16, %c0_17], %20 {strides = array<i32>} : memref<1x2x4xf32, #tpu.memory_space<vmem>>, vector<1x2x4xf32>,
    return
  }
  func.func @transform_0(%arg0: i32) -> (i32, i32) {
    %c0_i32 = arith.constant 0 : i32
    %c0_i32_0 = arith.constant 0 : i32
    %c0_i32_1 = arith.constant 0 : i32
    return %c0_i32, %c0_i32_0 : i32, i32
  }
  func.func @transform_1(%arg0: i32) -> (i32, i32, i32) {
    %c0_i32 = arith.constant 0 : i32
    %c0_i32_0 = arith.constant 0 : i32
    %c0_i32_1 = arith.constant 0 : i32
    return %arg0, %c0_i32, %c0_i32_0 : i32, i32, i32
  }
  func.func @transform_2(%arg0: i32) -> (i32, i32, i32) {
    %c0_i32 = arith.constant 0 : i32
    %c0_i32_0 = arith.constant 0 : i32
    %c0_i32_1 = arith.constant 0 : i32
    return %arg0, %c0_i32, %c0_i32_0 : i32, i32, i32
  }
  func.func @transform_3(%arg0: i32) -> (i32, i32, i32) {
    %c0_i32 = arith.constant 0 : i32
    %c0_i32_0 = arith.constant 0 : i32
    %c0_i32_1 = arith.constant 0 : i32
    return %arg0, %c0_i32, %c0_i32_0 : i32, i32, i32
  }
  func.func @transform_4(%arg0: i32) -> (i32, i32, i32) {
    %c0_i32 = arith.constant 0 : i32
    %c0_i32_0 = arith.constant 0 : i32
    %c0_i32_1 = arith.constant 0 : i32
    return %arg0, %c0_i32, %c0_i32_0 : i32, i32, i32
  }
  func.func @transform_5(%arg0: i32) -> (i32, i32, i32) {
    %c0_i32 = arith.constant 0 : i32
    %c0_i32_0 = arith.constant 0 : i32
    %c0_i32_1 = arith.constant 0 : i32
    return %arg0, %c0_i32, %c0_i32_0 : i32, i32, i32
  }
}

</mosaic_0001>

<llo_original>
// kernel: tpu_custom_call.1
$region0: #{tpu_custom_call.1}
  #allocation0 [shape = 'u32[]', space=smem, size = 0x4, offset = 0x4, fixed_abs, tag = 'smem constant byte address 0x4 - core index']
  #allocation1 [shape = 'u32[144,128]{1,0:T(1,128)}', space=vmem, size = 0x12000, scoped, tag = 'internal scratch']
  %s0 = inlined_call_operand.hbm [shape: bf16[2,768], index: 0, kind: input, shape index: {}]
  %s1 = inlined_call_operand.hbm [shape: bf16[2,768,768], index: 1, kind: input, shape index: {}]
  %s2 = inlined_call_operand.hbm [shape: f32[2,1,768], index: 2, kind: input, shape index: {}]
  %s3 = inlined_call_operand.hbm [shape: bf16[2,4,768], index: 3, kind: input, shape index: {}]
  %s4 = inlined_call_operand.hbm [shape: f32[2,1,4], index: 4, kind: input, shape index: {}]
  %s5 = inlined_call_operand.hbm [shape: f32[2,2,4], index: 5, kind: output, shape index: {}]
  %s6 = sld [smem:[#allocation0]]
  $region73: #{tpu_custom_call.1} parent=0
    _
  %s8 = ssub.s32 1, %s6
  %s9 = scalar_select 0, %s8, %s6
  $region1: #{tpu_custom_call.1} parent=0
    #allocation2 [shape = 'u8[3072]{0}', space=vmem, size = 0xc00, scoped, tag = 'input window, operand 0, single buffered']
    #allocation3 [shape = 's32[2]{0}', space=sflag, size = 0x8, scoped, tag = 'scoped memory for tpu_custom_call.1']
    #allocation4 [shape = 's32[2]{0}', space=sflag, size = 0x8, scoped, tag = 'scoped memory for tpu_custom_call.1']
    #allocation5 [shape = 'u8[2359296]{0}', space=vmem, size = 0x240000, scoped, tag = 'input window, operand 1']
    #allocation6 [shape = 's32[2]{0}', space=sflag, size = 0x8, scoped, tag = 'scoped memory for tpu_custom_call.1']
    #allocation7 [shape = 'u8[6144]{0}', space=vmem, size = 0x1800, scoped, tag = 'input window, operand 2']
    #allocation8 [shape = 'u8[12288]{0}', space=vmem, size = 0x3000, scoped, tag = 'input window, operand 3']
    #allocation9 [shape = 's32[2]{0}', space=sflag, size = 0x8, scoped, tag = 'scoped memory for tpu_custom_call.1']
    #allocation10 [shape = 'u8[1024]{0}', space=vmem, size = 0x400, scoped, tag = 'input window, operand 4']
    #allocation11 [shape = 'u8[2048]{0}', space=vmem, size = 0x800, scoped, tag = 'output window, operand 0']
    %10 = vsyncpa [#allocation3], 0
    %11 = vsyncpa [#allocation6], 0
    %s12 = scalar_lea.sflag [#allocation6], 1
    %13 = vsyncpa %s12, 0
    %14 = vsyncpa [#allocation9], 0
    %s15 = scalar_lea.sflag [#allocation9], 1
    %16 = vsyncpa %s15, 0
    %17 = vsyncpa [#allocation4], 0
    %s18 = scalar_lea.sflag [#allocation4], 1
    %19 = vsyncpa %s18, 0
    loop: start=0, step=1, limit=4
    $region2: #{tpu_custom_call.1} parent=1 // loop_pre_header
      _
    $region3: #{tpu_custom_call.1} parent=1 // loop_header
      %s21 = sphi 0, %s25
      %p22 = scmp.ge.s32.totalorder %s21, 4
      %s29 = sphi 0, %s29
      %s31 = sphi 0, %s29
      %s32 = sphi 0, %s31
      %s46 = sphi 0, %s32
      %s52 = sphi 0, %s54
      %s55 = sphi 0, %s52
      %s56 = sphi 0, %s55
      %s72 = sphi 0, %s56
      %s78 = sphi 0, %s80
      %s81 = sphi 0, %s78
      %s82 = sphi 0, %s81
      %s98 = sphi 0, %s82
      %s104 = sphi 0, %s106
      %s107 = sphi 0, %s104
      %s108 = sphi 0, %s107
      %s124 = sphi 0, %s108
      %s130 = sphi 0, %s132
      %s133 = sphi 0, %s130
      %s134 = sphi 0, %s133
      %s150 = sphi 0, %s134
      %s156 = sphi 0, %s158
      %s159 = sphi 0, %s156
      %s160 = sphi 0, %s159
      %s176 = sphi 0, %s160
    $region4: #{tpu_custom_call.1} parent=1 // loop_header_branch
      %24 = sbr.rel (%p22) target = $region8
    $region5: #{tpu_custom_call.1} parent=1 // loop_body
      %s26 = ssub.s32 %s21, 1
      %s27 = ssub.s32 %s21, 2
      %s28 = sadd.s32 %s21, 1
      %s30 = sadd.s32 %s29, 1
      %p33 = scmp.eq.s32.totalorder %s21, 1
      %p34 = scmp.ne.s32.totalorder %s29, %s31
      %p35 = scmp.eq.s32.totalorder %s21, 0
      %p36 = por %p34, %p35
      %p37 = scmp.ne.s32.totalorder %s29, %s31
      %p38 = scmp.eq.s32.totalorder %s26, 1
      %p39 = por %p37, %p38
      %p40 = scmp.ne.s32.totalorder %s31, %s32
      %p41 = scmp.eq.s32.totalorder %s26, 0
      %p42 = por %p40, %p41
      %p43 = scmp.ne.s32.totalorder %s31, %s32
      %p44 = scmp.eq.s32.totalorder %s27, 1
      %p45 = por %p43, %p44
      %p47 = scmp.ne.s32.totalorder %s32, %s46
      %p48 = scmp.eq.s32.totalorder %s27, 0
      %p49 = por %p47, %p48
      %s50 = ssub.s32 %s21, %s28
      %p51 = scmp.eq.s32.totalorder %s50, 0
      %s53 = sadd.s32 %s52, 1
      %s54 = scalar_select %p51, %s52, %s53
      %p57 = pneg %p51
      %p58 = scmp.eq.s32.totalorder %s21, 1
      %p59 = por %p57, %p58
      %p60 = scmp.ne.s32.totalorder %s52, %s55
      %p61 = scmp.eq.s32.totalorder %s21, 0
      %p62 = por %p60, %p61
      %p63 = scmp.ne.s32.totalorder %s52, %s55
      %p64 = scmp.eq.s32.totalorder %s26, 1
      %p65 = por %p63, %p64
      %p66 = scmp.ne.s32.totalorder %s55, %s56
      %p67 = scmp.eq.s32.totalorder %s26, 0
      %p68 = por %p66, %p67
      %p69 = scmp.ne.s32.totalorder %s55, %s56
      %p70 = scmp.eq.s32.totalorder %s27, 1
      %p71 = por %p69, %p70
      %p73 = scmp.ne.s32.totalorder %s56, %s72
      %p74 = scmp.eq.s32.totalorder %s27, 0
      %p75 = por %p73, %p74
      %s76 = ssub.s32 %s21, %s28
      %p77 = scmp.eq.s32.totalorder %s76, 0
      %s79 = sadd.s32 %s78, 1
      %s80 = scalar_select %p77, %s78, %s79
      %p83 = pneg %p77
      %p84 = scmp.eq.s32.totalorder %s21, 1
      %p85 = por %p83, %p84
      %p86 = scmp.ne.s32.totalorder %s78, %s81
      %p87 = scmp.eq.s32.totalorder %s21, 0
      %p88 = por %p86, %p87
      %p89 = scmp.ne.s32.totalorder %s78, %s81
      %p90 = scmp.eq.s32.totalorder %s26, 1
      %p91 = por %p89, %p90
      %p92 = scmp.ne.s32.totalorder %s81, %s82
      %p93 = scmp.eq.s32.totalorder %s26, 0
      %p94 = por %p92, %p93
      %p95 = scmp.ne.s32.totalorder %s81, %s82
      %p96 = scmp.eq.s32.totalorder %s27, 1
      %p97 = por %p95, %p96
      %p99 = scmp.ne.s32.totalorder %s82, %s98
      %p100 = scmp.eq.s32.totalorder %s27, 0
      %p101 = por %p99, %p100
      %s102 = ssub.s32 %s21, %s28
      %p103 = scmp.eq.s32.totalorder %s102, 0
      %s105 = sadd.s32 %s104, 1
      %s106 = scalar_select %p103, %s104, %s105
      %p109 = pneg %p103
      %p110 = scmp.eq.s32.totalorder %s21, 1
      %p111 = por %p109, %p110
      %p112 = scmp.ne.s32.totalorder %s104, %s107
      %p113 = scmp.eq.s32.totalorder %s21, 0
      %p114 = por %p112, %p113
      %p115 = scmp.ne.s32.totalorder %s104, %s107
      %p116 = scmp.eq.s32.totalorder %s26, 1
      %p117 = por %p115, %p116
      %p118 = scmp.ne.s32.totalorder %s107, %s108
      %p119 = scmp.eq.s32.totalorder %s26, 0
      %p120 = por %p118, %p119
      %p121 = scmp.ne.s32.totalorder %s107, %s108
      %p122 = scmp.eq.s32.totalorder %s27, 1
      %p123 = por %p121, %p122
      %p125 = scmp.ne.s32.totalorder %s108, %s124
      %p126 = scmp.eq.s32.totalorder %s27, 0
      %p127 = por %p125, %p126
      %s128 = ssub.s32 %s21, %s28
      %p129 = scmp.eq.s32.totalorder %s128, 0
      %s131 = sadd.s32 %s130, 1
      %s132 = scalar_select %p129, %s130, %s131
      %p135 = pneg %p129
      %p136 = scmp.eq.s32.totalorder %s21, 1
      %p137 = por %p135, %p136
      %p138 = scmp.ne.s32.totalorder %s130, %s133
      %p139 = scmp.eq.s32.totalorder %s21, 0
      %p140 = por %p138, %p139
      %p141 = scmp.ne.s32.totalorder %s130, %s133
      %p142 = scmp.eq.s32.totalorder %s26, 1
      %p143 = por %p141, %p142
      %p144 = scmp.ne.s32.totalorder %s133, %s134
      %p145 = scmp.eq.s32.totalorder %s26, 0
      %p146 = por %p144, %p145
      %p147 = scmp.ne.s32.totalorder %s133, %s134
      %p148 = scmp.eq.s32.totalorder %s27, 1
      %p149 = por %p147, %p148
      %p151 = scmp.ne.s32.totalorder %s134, %s150
      %p152 = scmp.eq.s32.totalorder %s27, 0
      %p153 = por %p151, %p152
      %s154 = ssub.s32 %s21, %s28
      %p155 = scmp.eq.s32.totalorder %s154, 0
      %s157 = sadd.s32 %s156, 1
      %s158 = scalar_select %p155, %s156, %s157
      %p161 = pneg %p155
      %p162 = scmp.eq.s32.totalorder %s21, 1
      %p163 = por %p161, %p162
      %p164 = scmp.ne.s32.totalorder %s156, %s159
      %p165 = scmp.eq.s32.totalorder %s21, 0
      %p166 = por %p164, %p165
      %p167 = scmp.ne.s32.totalorder %s156, %s159
      %p168 = scmp.eq.s32.totalorder %s26, 1
      %p169 = por %p167, %p168
      %p170 = scmp.ne.s32.totalorder %s159, %s160
      %p171 = scmp.eq.s32.totalorder %s26, 0
      %p172 = por %p170, %p171
      %p173 = scmp.ne.s32.totalorder %s159, %s160
      %p174 = scmp.eq.s32.totalorder %s27, 1
      %p175 = por %p173, %p174
      %p177 = scmp.ne.s32.totalorder %s160, %s176
      %p178 = scmp.eq.s32.totalorder %s27, 0
      %p179 = por %p177, %p178
      %p180 = scmp.le.s32.totalorder 1, %s21
      %p181 = scmp.lt.s32.totalorder %s21, 3
      %p182 = pnand %p180, %p181
      %p183 = pneg %p182
      // Predicated region
      $region9: #{tpu_custom_call.1} parent=5 // pred_check
        _
      $region10: #{tpu_custom_call.1} parent=5 // pred_check_branch
        %185 = sbr.rel (%p182) target = $region12
      $region11: #{tpu_custom_call.1} parent=5 // pred_region
        %s186 = ssub.s32 %s21, 1
        // Predicated region
        $region13: #{tpu_custom_call.1} parent=11 // pred_check
          %p187 = pneg %p42
        $region14: #{tpu_custom_call.1} parent=11 // pred_check_branch
          %189 = sbr.rel (%p187) target = $region16
        $region15: #{tpu_custom_call.1} parent=11 // pred_region
          %s191 = ssub.s32 96, 96
          %192 = vsyncadd [#allocation3], %s191
          %s194 = sshll.u32 [#allocation2], 4
          %s195 = int_to_ptr.vmem [resolvable:$true] %s194
          %197 = dma.hbm_to_vmem [thread:$0]  %s0, 96, %s195, [#allocation3]
        $region16: #{tpu_custom_call.1} parent=11 // pred_fallthru
          _
      $region12: #{tpu_custom_call.1} parent=5 // pred_fallthru
        _
      %p198 = scmp.lt.s32.totalorder %s21, 2
      // Predicated region
      $region17: #{tpu_custom_call.1} parent=5 // pred_check
        %p199 = pneg %p198
      $region18: #{tpu_custom_call.1} parent=5 // pred_check_branch
        %201 = sbr.rel (%p199) target = $region20
      $region19: #{tpu_custom_call.1} parent=5 // pred_region
        // Predicated region
        $region21: #{tpu_custom_call.1} parent=19 // pred_check
          %p202 = pneg %p62
        $region22: #{tpu_custom_call.1} parent=19 // pred_check_branch
          %204 = sbr.rel (%p202) target = $region24
        $region23: #{tpu_custom_call.1} parent=19 // pred_region
          %s205 = sand.u32 %s21, 1
          %s206 = scalar_lea.sflag [#allocation6], %s205
          %s207 = sand.u32 %s52, 1
          %s208 = smul.addr %s207, 2304
          %s209 = scalar_lea.vmem [#allocation5], %s208
          %s211 = ssub.s32 36864, 36864
          %212 = vsyncadd %s206, %s211
          %s213 = smul.addr %s21, 576
          %s214 = smul.addr %s213, 64
          %s215 = scalar_lea.hbm %s1, %s214
          %s216 = sshll.u32 %s209, 4
          %s217 = int_to_ptr.vmem [resolvable:$true] %s216
          %222 = dma.hbm_to_vmem [thread:$0]  %s215, 36864, %s217, %s206, 384, 384, 24
        $region24: #{tpu_custom_call.1} parent=19 // pred_fallthru
          _
        // Predicated region
        $region25: #{tpu_custom_call.1} parent=19 // pred_check
          %p223 = pneg %p88
        $region26: #{tpu_custom_call.1} parent=19 // pred_check_branch
          %225 = sbr.rel (%p223) target = $region28
        $region27: #{tpu_custom_call.1} parent=19 // pred_region
          %s226 = sand.u32 %s21, 1
          %s227 = scalar_lea.sflag [#allocation6], %s226
          %s228 = sand.u32 %s78, 1
          %s229 = smul.addr %s228, 6
          %s230 = scalar_lea.vmem [#allocation7], %s229
          %s232 = ssub.s32 96, 96
          %233 = vsyncadd %s227, %s232
          %s234 = smul.addr %s21, 6
          %s235 = smul.addr %s234, 16
          %s236 = scalar_lea.hbm %s2, %s235
          %s238 = sshll.u32 %s230, 4
          %s239 = int_to_ptr.vmem [resolvable:$true] %s238
          %241 = dma.hbm_to_vmem [thread:$0]  %s236, 96, %s239, %s227
        $region28: #{tpu_custom_call.1} parent=19 // pred_fallthru
          _
        // Predicated region
        $region29: #{tpu_custom_call.1} parent=19 // pred_check
          %p242 = pneg %p114
        $region30: #{tpu_custom_call.1} parent=19 // pred_check_branch
          %244 = sbr.rel (%p242) target = $region32
        $region31: #{tpu_custom_call.1} parent=19 // pred_region
          %s245 = sand.u32 %s21, 1
          %s246 = scalar_lea.sflag [#allocation9], %s245
          %s247 = sand.u32 %s104, 1
          %s248 = smul.addr %s247, 12
          %s249 = scalar_lea.vmem [#allocation8], %s248
          %s251 = ssub.s32 192, 192
          %252 = vsyncadd %s246, %s251
          %s253 = smul.addr %s21, 6
          %s254 = smul.addr %s253, 32
          %s255 = scalar_lea.hbm %s3, %s254
          %s257 = sshll.u32 %s249, 4
          %s258 = int_to_ptr.vmem [resolvable:$true] %s257
          %260 = dma.hbm_to_vmem [thread:$0]  %s255, 192, %s258, %s246
        $region32: #{tpu_custom_call.1} parent=19 // pred_fallthru
          _
        // Predicated region
        $region33: #{tpu_custom_call.1} parent=19 // pred_check
          %p261 = pneg %p140
        $region34: #{tpu_custom_call.1} parent=19 // pred_check_branch
          %263 = sbr.rel (%p261) target = $region36
        $region35: #{tpu_custom_call.1} parent=19 // pred_region
          %s264 = sand.u32 %s21, 1
          %s265 = scalar_lea.sflag [#allocation9], %s264
          %s266 = sand.u32 %s130, 1
          %s267 = scalar_lea.vmem [#allocation10], %s266
          %s269 = ssub.s32 16, 16
          %270 = vsyncadd %s265, %s269
          %s271 = smul.addr %s21, 16
          %s272 = scalar_lea.hbm %s4, %s271
          %s274 = sshll.u32 %s267, 4
          %s275 = int_to_ptr.vmem [resolvable:$true] %s274
          %277 = dma.hbm_to_vmem [thread:$0]  %s272, 16, %s275, %s265
        $region36: #{tpu_custom_call.1} parent=19 // pred_fallthru
          _
      $region20: #{tpu_custom_call.1} parent=5 // pred_fallthru
        _
      %p278 = scmp.le.s32.totalorder 1, %s21
      %p279 = scmp.lt.s32.totalorder %s21, 3
      %p280 = pnand %p278, %p279
      %p281 = pneg %p280
      // Predicated region
      $region37: #{tpu_custom_call.1} parent=5 // pred_check
        _
      $region38: #{tpu_custom_call.1} parent=5 // pred_check_branch
        %283 = sbr.rel (%p280) target = $region40
      $region39: #{tpu_custom_call.1} parent=5 // pred_region
        %s284 = ssub.s32 %s21, 1
        // Predicated region
        $region41: #{tpu_custom_call.1} parent=39 // pred_check
          %p285 = pneg %p42
        $region42: #{tpu_custom_call.1} parent=39 // pred_check_branch
          %287 = sbr.rel (%p285) target = $region44
        $region43: #{tpu_custom_call.1} parent=39 // pred_region
          %288 = dma.done [#allocation3], 96
        $region44: #{tpu_custom_call.1} parent=39 // pred_fallthru
          _
        %s289 = sand.u32 %s26, 1
        %s290 = scalar_lea.sflag [#allocation6], %s289
        %s291 = sand.u32 %s55, 1
        %s292 = smul.addr %s291, 2304
        %s293 = scalar_lea.vmem [#allocation5], %s292
        // Predicated region
        $region45: #{tpu_custom_call.1} parent=39 // pred_check
          %p294 = pneg %p68
        $region46: #{tpu_custom_call.1} parent=39 // pred_check_branch
          %296 = sbr.rel (%p294) target = $region48
        $region47: #{tpu_custom_call.1} parent=39 // pred_region
          %297 = dma.done %s290, 36864
        $region48: #{tpu_custom_call.1} parent=39 // pred_fallthru
          _
        %s298 = sand.u32 %s26, 1
        %s299 = scalar_lea.sflag [#allocation6], %s298
        %s300 = sand.u32 %s81, 1
        %s301 = smul.addr %s300, 6
        %s302 = scalar_lea.vmem [#allocation7], %s301
        // Predicated region
        $region49: #{tpu_custom_call.1} parent=39 // pred_check
          %p303 = pneg %p94
        $region50: #{tpu_custom_call.1} parent=39 // pred_check_branch
          %305 = sbr.rel (%p303) target = $region52
        $region51: #{tpu_custom_call.1} parent=39 // pred_region
          %306 = dma.done %s299, 96
        $region52: #{tpu_custom_call.1} parent=39 // pred_fallthru
          _
        %s307 = sand.u32 %s26, 1
        %s308 = scalar_lea.sflag [#allocation9], %s307
        %s309 = sand.u32 %s107, 1
        %s310 = smul.addr %s309, 12
        %s311 = scalar_lea.vmem [#allocation8], %s310
        // Predicated region
        $region53: #{tpu_custom_call.1} parent=39 // pred_check
          %p312 = pneg %p120
        $region54: #{tpu_custom_call.1} parent=39 // pred_check_branch
          %314 = sbr.rel (%p312) target = $region56
        $region55: #{tpu_custom_call.1} parent=39 // pred_region
          %315 = dma.done %s308, 192
        $region56: #{tpu_custom_call.1} parent=39 // pred_fallthru
          _
        %s316 = sand.u32 %s26, 1
        %s317 = scalar_lea.sflag [#allocation9], %s316
        %s318 = sand.u32 %s133, 1
        %s319 = scalar_lea.vmem [#allocation10], %s318
        // Predicated region
        $region57: #{tpu_custom_call.1} parent=39 // pred_check
          %p320 = pneg %p146
        $region58: #{tpu_custom_call.1} parent=39 // pred_check_branch
          %322 = sbr.rel (%p320) target = $region60
        $region59: #{tpu_custom_call.1} parent=39 // pred_region
          %323 = dma.done %s317, 16
        $region60: #{tpu_custom_call.1} parent=39 // pred_fallthru
          _
        %p324 = pneg %p42
        %p325 = pneg %p39
        %s326 = sand.u32 %s26, 1
        %s327 = scalar_lea.sflag [#allocation6], %s326
        %s328 = sand.u32 %s55, 1
        %s329 = smul.addr %s328, 2304
        %s330 = scalar_lea.vmem [#allocation5], %s329
        %p331 = pneg %p68
        %p332 = pneg %p65
        %s333 = sand.u32 %s26, 1
        %s334 = scalar_lea.sflag [#allocation6], %s333
        %s335 = sand.u32 %s81, 1
        %s336 = smul.addr %s335, 6
        %s337 = scalar_lea.vmem [#allocation7], %s336
        %p338 = pneg %p94
        %p339 = pneg %p91
        %s340 = sand.u32 %s26, 1
        %s341 = scalar_lea.sflag [#allocation9], %s340
        %s342 = sand.u32 %s107, 1
        %s343 = smul.addr %s342, 12
        %s344 = scalar_lea.vmem [#allocation8], %s343
        %p345 = pneg %p120
        %p346 = pneg %p117
        %s347 = sand.u32 %s26, 1
        %s348 = scalar_lea.sflag [#allocation9], %s347
        %s349 = sand.u32 %s133, 1
        %s350 = scalar_lea.vmem [#allocation10], %s349
        %p351 = pneg %p146
        %p352 = pneg %p143
        %p353 = pneg %p172
        %p354 = pneg %p169
        %s355 = sand.u32 %s159, 1
        %s356 = scalar_lea.sflag [#allocation4], %s355
        %s357 = sand.u32 %s159, 1
        %s358 = smul.addr %s357, 2
        %s359 = scalar_lea.vmem [#allocation11], %s358
        %v361 = vld [vmem:[#allocation2] sm:$0x3f]
        %v362 = vld [vmem:[%s293] sm:$0xff]
        %v363 = vld [vmem:[%s293 + $0x8] sm:$0xff]
        %v364 = vld [vmem:[%s293 + $0x10] sm:$0xff]
        %v365 = vld [vmem:[%s293 + $0x18] sm:$0xff]
        %v366 = vld [vmem:[%s293 + $0x20] sm:$0xff]
        %v367 = vld [vmem:[%s293 + $0x28] sm:$0xff]
        %v368 = vld [vmem:[%s293 + $0x30] sm:$0xff]
        %v369 = vld [vmem:[%s293 + $0x38] sm:$0xff]
        %v370 = vld [vmem:[%s293 + $0x40] sm:$0xff]
        %v371 = vld [vmem:[%s293 + $0x48] sm:$0xff]
        %v372 = vld [vmem:[%s293 + $0x50] sm:$0xff]
        %v373 = vld [vmem:[%s293 + $0x58] sm:$0xff]
        %v374 = vld [vmem:[%s293 + $0x60] sm:$0xff]
        %v375 = vld [vmem:[%s293 + $0x68] sm:$0xff]
        %v376 = vld [vmem:[%s293 + $0x70] sm:$0xff]
        %v377 = vld [vmem:[%s293 + $0x78] sm:$0xff]
        %v378 = vld [vmem:[%s293 + $0x80] sm:$0xff]
        %v379 = vld [vmem:[%s293 + $0x88] sm:$0xff]
        %v380 = vld [vmem:[%s293 + $0x90] sm:$0xff]
        %v381 = vld [vmem:[%s293 + $0x98] sm:$0xff]
        %v382 = vld [vmem:[%s293 + $0xa0] sm:$0xff]
        %v383 = vld [vmem:[%s293 + $0xa8] sm:$0xff]
        %v384 = vld [vmem:[%s293 + $0xb0] sm:$0xff]
        %v385 = vld [vmem:[%s293 + $0xb8] sm:$0xff]
        %v386 = vld [vmem:[%s293 + $0xc0] sm:$0xff]
        %v387 = vld [vmem:[%s293 + $0xc8] sm:$0xff]
        %v388 = vld [vmem:[%s293 + $0xd0] sm:$0xff]
        %v389 = vld [vmem:[%s293 + $0xd8] sm:$0xff]
        %v390 = vld [vmem:[%s293 + $0xe0] sm:$0xff]
        %v391 = vld [vmem:[%s293 + $0xe8] sm:$0xff]
        %v392 = vld [vmem:[%s293 + $0xf0] sm:$0xff]
        %v393 = vld [vmem:[%s293 + $0xf8] sm:$0xff]
        %v394 = vld [vmem:[%s293 + $0x100] sm:$0xff]
        %v395 = vld [vmem:[%s293 + $0x108] sm:$0xff]
        %v396 = vld [vmem:[%s293 + $0x110] sm:$0xff]
        %v397 = vld [vmem:[%s293 + $0x118] sm:$0xff]
        %v398 = vld [vmem:[%s293 + $0x120] sm:$0xff]
        %v399 = vld [vmem:[%s293 + $0x128] sm:$0xff]
        %v400 = vld [vmem:[%s293 + $0x130] sm:$0xff]
        %v401 = vld [vmem:[%s293 + $0x138] sm:$0xff]
        %v402 = vld [vmem:[%s293 + $0x140] sm:$0xff]
        %v403 = vld [vmem:[%s293 + $0x148] sm:$0xff]
        %v404 = vld [vmem:[%s293 + $0x150] sm:$0xff]
        %v405 = vld [vmem:[%s293 + $0x158] sm:$0xff]
        %v406 = vld [vmem:[%s293 + $0x160] sm:$0xff]
        %v407 = vld [vmem:[%s293 + $0x168] sm:$0xff]
        %v408 = vld [vmem:[%s293 + $0x170] sm:$0xff]
        %v409 = vld [vmem:[%s293 + $0x178] sm:$0xff]
        %v410 = vld [vmem:[%s293 + $0x180] sm:$0xff]
        %v411 = vld [vmem:[%s293 + $0x188] sm:$0xff]
        %v412 = vld [vmem:[%s293 + $0x190] sm:$0xff]
        %v413 = vld [vmem:[%s293 + $0x198] sm:$0xff]
        %v414 = vld [vmem:[%s293 + $0x1a0] sm:$0xff]
        %v415 = vld [vmem:[%s293 + $0x1a8] sm:$0xff]
        %v416 = vld [vmem:[%s293 + $0x1b0] sm:$0xff]
        %v417 = vld [vmem:[%s293 + $0x1b8] sm:$0xff]
        %v418 = vld [vmem:[%s293 + $0x1c0] sm:$0xff]
        %v419 = vld [vmem:[%s293 + $0x1c8] sm:$0xff]
        %v420 = vld [vmem:[%s293 + $0x1d0] sm:$0xff]
        %v421 = vld [vmem:[%s293 + $0x1d8] sm:$0xff]
        %v422 = vld [vmem:[%s293 + $0x1e0] sm:$0xff]
        %v423 = vld [vmem:[%s293 + $0x1e8] sm:$0xff]
        %v424 = vld [vmem:[%s293 + $0x1f0] sm:$0xff]
        %v425 = vld [vmem:[%s293 + $0x1f8] sm:$0xff]
        %v426 = vld [vmem:[%s293 + $0x200] sm:$0xff]
        %v427 = vld [vmem:[%s293 + $0x208] sm:$0xff]
        %v428 = vld [vmem:[%s293 + $0x210] sm:$0xff]
        %v429 = vld [vmem:[%s293 + $0x218] sm:$0xff]
        %v430 = vld [vmem:[%s293 + $0x220] sm:$0xff]
        %v431 = vld [vmem:[%s293 + $0x228] sm:$0xff]
        %v432 = vld [vmem:[%s293 + $0x230] sm:$0xff]
        %v433 = vld [vmem:[%s293 + $0x238] sm:$0xff]
        %v434 = vld [vmem:[%s293 + $0x240] sm:$0xff]
        %v435 = vld [vmem:[%s293 + $0x248] sm:$0xff]
        %v436 = vld [vmem:[%s293 + $0x250] sm:$0xff]
        %v437 = vld [vmem:[%s293 + $0x258] sm:$0xff]
        %v438 = vld [vmem:[%s293 + $0x260] sm:$0xff]
        %v439 = vld [vmem:[%s293 + $0x268] sm:$0xff]
        %v440 = vld [vmem:[%s293 + $0x270] sm:$0xff]
        %v441 = vld [vmem:[%s293 + $0x278] sm:$0xff]
        %v442 = vld [vmem:[%s293 + $0x280] sm:$0xff]
        %v443 = vld [vmem:[%s293 + $0x288] sm:$0xff]
        %v444 = vld [vmem:[%s293 + $0x290] sm:$0xff]
        %v445 = vld [vmem:[%s293 + $0x298] sm:$0xff]
        %v446 = vld [vmem:[%s293 + $0x2a0] sm:$0xff]
        %v447 = vld [vmem:[%s293 + $0x2a8] sm:$0xff]
        %v448 = vld [vmem:[%s293 + $0x2b0] sm:$0xff]
        %v449 = vld [vmem:[%s293 + $0x2b8] sm:$0xff]
        %v450 = vld [vmem:[%s293 + $0x2c0] sm:$0xff]
        %v451 = vld [vmem:[%s293 + $0x2c8] sm:$0xff]
        %v452 = vld [vmem:[%s293 + $0x2d0] sm:$0xff]
        %v453 = vld [vmem:[%s293 + $0x2d8] sm:$0xff]
        %v454 = vld [vmem:[%s293 + $0x2e0] sm:$0xff]
        %v455 = vld [vmem:[%s293 + $0x2e8] sm:$0xff]
        %v456 = vld [vmem:[%s293 + $0x2f0] sm:$0xff]
        %v457 = vld [vmem:[%s293 + $0x2f8] sm:$0xff]
        %v458 = vld [vmem:[%s293 + $0x300] sm:$0xff]
        %v459 = vld [vmem:[%s293 + $0x308] sm:$0xff]
        %v460 = vld [vmem:[%s293 + $0x310] sm:$0xff]
        %v461 = vld [vmem:[%s293 + $0x318] sm:$0xff]
        %v462 = vld [vmem:[%s293 + $0x320] sm:$0xff]
        %v463 = vld [vmem:[%s293 + $0x328] sm:$0xff]
        %v464 = vld [vmem:[%s293 + $0x330] sm:$0xff]
        %v465 = vld [vmem:[%s293 + $0x338] sm:$0xff]
        %v466 = vld [vmem:[%s293 + $0x340] sm:$0xff]
        %v467 = vld [vmem:[%s293 + $0x348] sm:$0xff]
        %v468 = vld [vmem:[%s293 + $0x350] sm:$0xff]
        %v469 = vld [vmem:[%s293 + $0x358] sm:$0xff]
        %v470 = vld [vmem:[%s293 + $0x360] sm:$0xff]
        %v471 = vld [vmem:[%s293 + $0x368] sm:$0xff]
        %v472 = vld [vmem:[%s293 + $0x370] sm:$0xff]
        %v473 = vld [vmem:[%s293 + $0x378] sm:$0xff]
        %v474 = vld [vmem:[%s293 + $0x380] sm:$0xff]
        %v475 = vld [vmem:[%s293 + $0x388] sm:$0xff]
        %v476 = vld [vmem:[%s293 + $0x390] sm:$0xff]
        %v477 = vld [vmem:[%s293 + $0x398] sm:$0xff]
        %v478 = vld [vmem:[%s293 + $0x3a0] sm:$0xff]
        %v479 = vld [vmem:[%s293 + $0x3a8] sm:$0xff]
        %v480 = vld [vmem:[%s293 + $0x3b0] sm:$0xff]
        %v481 = vld [vmem:[%s293 + $0x3b8] sm:$0xff]
        %v482 = vld [vmem:[%s293 + $0x3c0] sm:$0xff]
        %v483 = vld [vmem:[%s293 + $0x3c8] sm:$0xff]
        %v484 = vld [vmem:[%s293 + $0x3d0] sm:$0xff]
        %v485 = vld [vmem:[%s293 + $0x3d8] sm:$0xff]
        %v486 = vld [vmem:[%s293 + $0x3e0] sm:$0xff]
        %v487 = vld [vmem:[%s293 + $0x3e8] sm:$0xff]
        %v488 = vld [vmem:[%s293 + $0x3f0] sm:$0xff]
        %v489 = vld [vmem:[%s293 + $0x3f8] sm:$0xff]
        %v490 = vld [vmem:[%s293 + $0x400] sm:$0xff]
        %v491 = vld [vmem:[%s293 + $0x408] sm:$0xff]
        %v492 = vld [vmem:[%s293 + $0x410] sm:$0xff]
        %v493 = vld [vmem:[%s293 + $0x418] sm:$0xff]
        %v494 = vld [vmem:[%s293 + $0x420] sm:$0xff]
        %v495 = vld [vmem:[%s293 + $0x428] sm:$0xff]
        %v496 = vld [vmem:[%s293 + $0x430] sm:$0xff]
        %v497 = vld [vmem:[%s293 + $0x438] sm:$0xff]
        %v498 = vld [vmem:[%s293 + $0x440] sm:$0xff]
        %v499 = vld [vmem:[%s293 + $0x448] sm:$0xff]
        %v500 = vld [vmem:[%s293 + $0x450] sm:$0xff]
        %v501 = vld [vmem:[%s293 + $0x458] sm:$0xff]
        %v502 = vld [vmem:[%s293 + $0x460] sm:$0xff]
        %v503 = vld [vmem:[%s293 + $0x468] sm:$0xff]
        %v504 = vld [vmem:[%s293 + $0x470] sm:$0xff]
        %v505 = vld [vmem:[%s293 + $0x478] sm:$0xff]
        %v506 = vld [vmem:[%s293 + $0x480] sm:$0xff]
        %v507 = vld [vmem:[%s293 + $0x488] sm:$0xff]
        %v508 = vld [vmem:[%s293 + $0x490] sm:$0xff]
        %v509 = vld [vmem:[%s293 + $0x498] sm:$0xff]
        %v510 = vld [vmem:[%s293 + $0x4a0] sm:$0xff]
        %v511 = vld [vmem:[%s293 + $0x4a8] sm:$0xff]
        %v512 = vld [vmem:[%s293 + $0x4b0] sm:$0xff]
        %v513 = vld [vmem:[%s293 + $0x4b8] sm:$0xff]
        %v514 = vld [vmem:[%s293 + $0x4c0] sm:$0xff]
        %v515 = vld [vmem:[%s293 + $0x4c8] sm:$0xff]
        %v516 = vld [vmem:[%s293 + $0x4d0] sm:$0xff]
        %v517 = vld [vmem:[%s293 + $0x4d8] sm:$0xff]
        %v518 = vld [vmem:[%s293 + $0x4e0] sm:$0xff]
        %v519 = vld [vmem:[%s293 + $0x4e8] sm:$0xff]
        %v520 = vld [vmem:[%s293 + $0x4f0] sm:$0xff]
        %v521 = vld [vmem:[%s293 + $0x4f8] sm:$0xff]
        %v522 = vld [vmem:[%s293 + $0x500] sm:$0xff]
        %v523 = vld [vmem:[%s293 + $0x508] sm:$0xff]
        %v524 = vld [vmem:[%s293 + $0x510] sm:$0xff]
        %v525 = vld [vmem:[%s293 + $0x518] sm:$0xff]
        %v526 = vld [vmem:[%s293 + $0x520] sm:$0xff]
        %v527 = vld [vmem:[%s293 + $0x528] sm:$0xff]
        %v528 = vld [vmem:[%s293 + $0x530] sm:$0xff]
        %v529 = vld [vmem:[%s293 + $0x538] sm:$0xff]
        %v530 = vld [vmem:[%s293 + $0x540] sm:$0xff]
        %v531 = vld [vmem:[%s293 + $0x548] sm:$0xff]
        %v532 = vld [vmem:[%s293 + $0x550] sm:$0xff]
        %v533 = vld [vmem:[%s293 + $0x558] sm:$0xff]
        %v534 = vld [vmem:[%s293 + $0x560] sm:$0xff]
        %v535 = vld [vmem:[%s293 + $0x568] sm:$0xff]
        %v536 = vld [vmem:[%s293 + $0x570] sm:$0xff]
        %v537 = vld [vmem:[%s293 + $0x578] sm:$0xff]
        %v538 = vld [vmem:[%s293 + $0x580] sm:$0xff]
        %v539 = vld [vmem:[%s293 + $0x588] sm:$0xff]
        %v540 = vld [vmem:[%s293 + $0x590] sm:$0xff]
        %v541 = vld [vmem:[%s293 + $0x598] sm:$0xff]
        %v542 = vld [vmem:[%s293 + $0x5a0] sm:$0xff]
        %v543 = vld [vmem:[%s293 + $0x5a8] sm:$0xff]
        %v544 = vld [vmem:[%s293 + $0x5b0] sm:$0xff]
        %v545 = vld [vmem:[%s293 + $0x5b8] sm:$0xff]
        %v546 = vld [vmem:[%s293 + $0x5c0] sm:$0xff]
        %v547 = vld [vmem:[%s293 + $0x5c8] sm:$0xff]
        %v548 = vld [vmem:[%s293 + $0x5d0] sm:$0xff]
        %v549 = vld [vmem:[%s293 + $0x5d8] sm:$0xff]
        %v550 = vld [vmem:[%s293 + $0x5e0] sm:$0xff]
        %v551 = vld [vmem:[%s293 + $0x5e8] sm:$0xff]
        %v552 = vld [vmem:[%s293 + $0x5f0] sm:$0xff]
        %v553 = vld [vmem:[%s293 + $0x5f8] sm:$0xff]
        %v554 = vld [vmem:[%s293 + $0x600] sm:$0xff]
        %v555 = vld [vmem:[%s293 + $0x608] sm:$0xff]
        %v556 = vld [vmem:[%s293 + $0x610] sm:$0xff]
        %v557 = vld [vmem:[%s293 + $0x618] sm:$0xff]
        %v558 = vld [vmem:[%s293 + $0x620] sm:$0xff]
        %v559 = vld [vmem:[%s293 + $0x628] sm:$0xff]
        %v560 = vld [vmem:[%s293 + $0x630] sm:$0xff]
        %v561 = vld [vmem:[%s293 + $0x638] sm:$0xff]
        %v562 = vld [vmem:[%s293 + $0x640] sm:$0xff]
        %v563 = vld [vmem:[%s293 + $0x648] sm:$0xff]
        %v564 = vld [vmem:[%s293 + $0x650] sm:$0xff]
        %v565 = vld [vmem:[%s293 + $0x658] sm:$0xff]
        %v566 = vld [vmem:[%s293 + $0x660] sm:$0xff]
        %v567 = vld [vmem:[%s293 + $0x668] sm:$0xff]
        %v568 = vld [vmem:[%s293 + $0x670] sm:$0xff]
        %v569 = vld [vmem:[%s293 + $0x678] sm:$0xff]
        %v570 = vld [vmem:[%s293 + $0x680] sm:$0xff]
        %v571 = vld [vmem:[%s293 + $0x688] sm:$0xff]
        %v572 = vld [vmem:[%s293 + $0x690] sm:$0xff]
        %v573 = vld [vmem:[%s293 + $0x698] sm:$0xff]
        %v574 = vld [vmem:[%s293 + $0x6a0] sm:$0xff]
        %v575 = vld [vmem:[%s293 + $0x6a8] sm:$0xff]
        %v576 = vld [vmem:[%s293 + $0x6b0] sm:$0xff]
        %v577 = vld [vmem:[%s293 + $0x6b8] sm:$0xff]
        %v578 = vld [vmem:[%s293 + $0x6c0] sm:$0xff]
        %v579 = vld [vmem:[%s293 + $0x6c8] sm:$0xff]
        %v580 = vld [vmem:[%s293 + $0x6d0] sm:$0xff]
        %v581 = vld [vmem:[%s293 + $0x6d8] sm:$0xff]
        %v582 = vld [vmem:[%s293 + $0x6e0] sm:$0xff]
        %v583 = vld [vmem:[%s293 + $0x6e8] sm:$0xff]
        %v584 = vld [vmem:[%s293 + $0x6f0] sm:$0xff]
        %v585 = vld [vmem:[%s293 + $0x6f8] sm:$0xff]
        %v586 = vld [vmem:[%s293 + $0x700] sm:$0xff]
        %v587 = vld [vmem:[%s293 + $0x708] sm:$0xff]
        %v588 = vld [vmem:[%s293 + $0x710] sm:$0xff]
        %v589 = vld [vmem:[%s293 + $0x718] sm:$0xff]
        %v590 = vld [vmem:[%s293 + $0x720] sm:$0xff]
        %v591 = vld [vmem:[%s293 + $0x728] sm:$0xff]
        %v592 = vld [vmem:[%s293 + $0x730] sm:$0xff]
        %v593 = vld [vmem:[%s293 + $0x738] sm:$0xff]
        %v594 = vld [vmem:[%s293 + $0x740] sm:$0xff]
        %v595 = vld [vmem:[%s293 + $0x748] sm:$0xff]
        %v596 = vld [vmem:[%s293 + $0x750] sm:$0xff]
        %v597 = vld [vmem:[%s293 + $0x758] sm:$0xff]
        %v598 = vld [vmem:[%s293 + $0x760] sm:$0xff]
        %v599 = vld [vmem:[%s293 + $0x768] sm:$0xff]
        %v600 = vld [vmem:[%s293 + $0x770] sm:$0xff]
        %v601 = vld [vmem:[%s293 + $0x778] sm:$0xff]
        %v602 = vld [vmem:[%s293 + $0x780] sm:$0xff]
        %v603 = vld [vmem:[%s293 + $0x788] sm:$0xff]
        %v604 = vld [vmem:[%s293 + $0x790] sm:$0xff]
        %v605 = vld [vmem:[%s293 + $0x798] sm:$0xff]
        %v606 = vld [vmem:[%s293 + $0x7a0] sm:$0xff]
        %v607 = vld [vmem:[%s293 + $0x7a8] sm:$0xff]
        %v608 = vld [vmem:[%s293 + $0x7b0] sm:$0xff]
        %v609 = vld [vmem:[%s293 + $0x7b8] sm:$0xff]
        %v610 = vld [vmem:[%s293 + $0x7c0] sm:$0xff]
        %v611 = vld [vmem:[%s293 + $0x7c8] sm:$0xff]
        %v612 = vld [vmem:[%s293 + $0x7d0] sm:$0xff]
        %v613 = vld [vmem:[%s293 + $0x7d8] sm:$0xff]
        %v614 = vld [vmem:[%s293 + $0x7e0] sm:$0xff]
        %v615 = vld [vmem:[%s293 + $0x7e8] sm:$0xff]
        %v616 = vld [vmem:[%s293 + $0x7f0] sm:$0xff]
        %v617 = vld [vmem:[%s293 + $0x7f8] sm:$0xff]
        %v618 = vld [vmem:[%s293 + $0x800] sm:$0xff]
        %v619 = vld [vmem:[%s293 + $0x808] sm:$0xff]
        %v620 = vld [vmem:[%s293 + $0x810] sm:$0xff]
        %v621 = vld [vmem:[%s293 + $0x818] sm:$0xff]
        %v622 = vld [vmem:[%s293 + $0x820] sm:$0xff]
        %v623 = vld [vmem:[%s293 + $0x828] sm:$0xff]
        %v624 = vld [vmem:[%s293 + $0x830] sm:$0xff]
        %v625 = vld [vmem:[%s293 + $0x838] sm:$0xff]
        %v626 = vld [vmem:[%s293 + $0x840] sm:$0xff]
        %v627 = vld [vmem:[%s293 + $0x848] sm:$0xff]
        %v628 = vld [vmem:[%s293 + $0x850] sm:$0xff]
        %v629 = vld [vmem:[%s293 + $0x858] sm:$0xff]
        %v630 = vld [vmem:[%s293 + $0x860] sm:$0xff]
        %v631 = vld [vmem:[%s293 + $0x868] sm:$0xff]
        %v632 = vld [vmem:[%s293 + $0x870] sm:$0xff]
        %v633 = vld [vmem:[%s293 + $0x878] sm:$0xff]
        %v634 = vld [vmem:[%s293 + $0x880] sm:$0xff]
        %v635 = vld [vmem:[%s293 + $0x888] sm:$0xff]
        %v636 = vld [vmem:[%s293 + $0x890] sm:$0xff]
        %v637 = vld [vmem:[%s293 + $0x898] sm:$0xff]
        %v638 = vld [vmem:[%s293 + $0x8a0] sm:$0xff]
        %v639 = vld [vmem:[%s293 + $0x8a8] sm:$0xff]
        %v640 = vld [vmem:[%s293 + $0x8b0] sm:$0xff]
        %v641 = vld [vmem:[%s293 + $0x8b8] sm:$0xff]
        %v642 = vld [vmem:[%s293 + $0x8c0] sm:$0xff]
        %v643 = vld [vmem:[%s293 + $0x8c8] sm:$0xff]
        %v644 = vld [vmem:[%s293 + $0x8d0] sm:$0xff]
        %v645 = vld [vmem:[%s293 + $0x8d8] sm:$0xff]
        %v646 = vld [vmem:[%s293 + $0x8e0] sm:$0xff]
        %v647 = vld [vmem:[%s293 + $0x8e8] sm:$0xff]
        %v648 = vld [vmem:[%s293 + $0x8f0] sm:$0xff]
        %v649 = vld [vmem:[%s293 + $0x8f8] sm:$0xff]
        %v650 = vld [vmem:[%s302] sm:$0x3f]
        %v652 = vlaneseq
        %v653 = vshrl.u32 %v652, 7
        %v654 = vsub.s32 0, %v653
        %v655 = vrot.slane %v650, %v654
        %v656 = vlaneseq
        %v657 = vshrl.u32 %v656, 7
        %v658 = vsub.s32 1, %v657
        %v659 = vrot.slane %v650, %v658
        %v660 = vlaneseq
        %v661 = vshrl.u32 %v660, 7
        %v662 = vsub.s32 2, %v661
        %v663 = vrot.slane %v650, %v662
        %v664 = vlaneseq
        %v665 = vshrl.u32 %v664, 7
        %v666 = vsub.s32 3, %v665
        %v667 = vrot.slane %v650, %v666
        %v668 = vlaneseq
        %v669 = vshrl.u32 %v668, 7
        %v670 = vsub.s32 4, %v669
        %v671 = vrot.slane %v650, %v670
        %v672 = vlaneseq
        %v673 = vshrl.u32 %v672, 7
        %v674 = vsub.s32 5, %v673
        %v675 = vrot.slane %v650, %v674
        %v683 = vcombine.high %v361, %v361
        %v685 = vunpack.c.l.s4 1966171168
        %v686 = vunpack.c.0.s8 %v685
        %v687 = vlaneseq
        %v688 = vshrl.u32 %v687, 7
        %v689 = vsub.s32 %v686, %v688
        %v690 = vrot.slane %v361, %v689
        %v692 = vunpack.c.l.s4 1966171168
        %v693 = vunpack.c.0.s8 %v692
        %v694 = vlaneseq
        %v695 = vshrl.u32 %v694, 7
        %v696 = vsub.s32 %v693, %v695
        %v697 = vrot.slane %v683, %v696
        %v698 = vcombine.high %v690, %v690
        %v699 = vcombine.high %v697, %v697
        %v701 = vunpack.c.l.s4 1966171168
        %v702 = vunpack.c.0.s8 %v701
        %v703 = vlaneseq
        %v704 = vshrl.u32 %v703, 7
        %v705 = vsub.s32 %v702, %v704
        %v706 = vrot.slane %v690, %v705
        %v708 = vunpack.c.l.s4 1966171168
        %v709 = vunpack.c.0.s8 %v708
        %v710 = vlaneseq
        %v711 = vshrl.u32 %v710, 7
        %v712 = vsub.s32 %v709, %v711
        %v713 = vrot.slane %v697, %v712
        %v715 = vunpack.c.l.s4 1966171168
        %v716 = vunpack.c.0.s8 %v715
        %v717 = vlaneseq
        %v718 = vshrl.u32 %v717, 7
        %v719 = vsub.s32 %v716, %v718
        %v720 = vrot.slane %v698, %v719
        %v722 = vunpack.c.l.s4 1966171168
        %v723 = vunpack.c.0.s8 %v722
        %v724 = vlaneseq
        %v725 = vshrl.u32 %v724, 7
        %v726 = vsub.s32 %v723, %v725
        %v727 = vrot.slane %v699, %v726
        %v728 = vcombine.high %v706, %v706
        %v729 = vcombine.high %v720, %v720
        %v1024 = vunpack.c.l.b16 %v362
        %v1025 = vunpack.c.h.b16 %v362
        %v1026 = vunpack.c.l.b16 %v363
        %v1027 = vunpack.c.h.b16 %v363
        %v1028 = vunpack.c.l.b16 %v364
        %v1029 = vunpack.c.h.b16 %v364
        %v1030 = vunpack.c.l.b16 %v365
        %v1031 = vunpack.c.h.b16 %v365
        %v1032 = vunpack.c.l.b16 %v366
        %v1033 = vunpack.c.h.b16 %v366
        %v1034 = vunpack.c.l.b16 %v367
        %v1035 = vunpack.c.h.b16 %v367
        %v1036 = vunpack.c.l.b16 %v368
        %v1037 = vunpack.c.h.b16 %v368
        %v1038 = vunpack.c.l.b16 %v369
        %v1039 = vunpack.c.h.b16 %v369
        %v1040 = vunpack.c.l.b16 %v370
        %v1041 = vunpack.c.h.b16 %v370
        %v1042 = vunpack.c.l.b16 %v371
        %v1043 = vunpack.c.h.b16 %v371
        %v1044 = vunpack.c.l.b16 %v372
        %v1045 = vunpack.c.h.b16 %v372
        %v1046 = vunpack.c.l.b16 %v373
        %v1047 = vunpack.c.h.b16 %v373
        %v1048 = vunpack.c.l.b16 %v374
        %v1049 = vunpack.c.h.b16 %v374
        %v1050 = vunpack.c.l.b16 %v375
        %v1051 = vunpack.c.h.b16 %v375
        %v1052 = vunpack.c.l.b16 %v376
        %v1053 = vunpack.c.h.b16 %v376
        %v1054 = vunpack.c.l.b16 %v377
        %v1055 = vunpack.c.h.b16 %v377
        %v1056 = vunpack.c.l.b16 %v378
        %v1057 = vunpack.c.h.b16 %v378
        %v1058 = vunpack.c.l.b16 %v379
        %v1059 = vunpack.c.h.b16 %v379
        %v1060 = vunpack.c.l.b16 %v380
        %v1061 = vunpack.c.h.b16 %v380
        %v1062 = vunpack.c.l.b16 %v381
        %v1063 = vunpack.c.h.b16 %v381
        %v1064 = vunpack.c.l.b16 %v382
        %v1065 = vunpack.c.h.b16 %v382
        %v1066 = vunpack.c.l.b16 %v383
        %v1067 = vunpack.c.h.b16 %v383
        %v1068 = vunpack.c.l.b16 %v384
        %v1069 = vunpack.c.h.b16 %v384
        %v1070 = vunpack.c.l.b16 %v385
        %v1071 = vunpack.c.h.b16 %v385
        %v1072 = vunpack.c.l.b16 %v386
        %v1073 = vunpack.c.h.b16 %v386
        %v1074 = vunpack.c.l.b16 %v387
        %v1075 = vunpack.c.h.b16 %v387
        %v1076 = vunpack.c.l.b16 %v388
        %v1077 = vunpack.c.h.b16 %v388
        %v1078 = vunpack.c.l.b16 %v389
        %v1079 = vunpack.c.h.b16 %v389
        %v1080 = vunpack.c.l.b16 %v390
        %v1081 = vunpack.c.h.b16 %v390
        %v1082 = vunpack.c.l.b16 %v391
        %v1083 = vunpack.c.h.b16 %v391
        %v1084 = vunpack.c.l.b16 %v392
        %v1085 = vunpack.c.h.b16 %v392
        %v1086 = vunpack.c.l.b16 %v393
        %v1087 = vunpack.c.h.b16 %v393
        %v1088 = vunpack.c.l.b16 %v394
        %v1089 = vunpack.c.h.b16 %v394
        %v1090 = vunpack.c.l.b16 %v395
        %v1091 = vunpack.c.h.b16 %v395
        %v1092 = vunpack.c.l.b16 %v396
        %v1093 = vunpack.c.h.b16 %v396
        %v1094 = vunpack.c.l.b16 %v397
        %v1095 = vunpack.c.h.b16 %v397
        %v1096 = vunpack.c.l.b16 %v398
        %v1097 = vunpack.c.h.b16 %v398
        %v1098 = vunpack.c.l.b16 %v399
        %v1099 = vunpack.c.h.b16 %v399
        %v1100 = vunpack.c.l.b16 %v400
        %v1101 = vunpack.c.h.b16 %v400
        %v1102 = vunpack.c.l.b16 %v401
        %v1103 = vunpack.c.h.b16 %v401
        %v1104 = vunpack.c.l.b16 %v402
        %v1105 = vunpack.c.h.b16 %v402
        %v1106 = vunpack.c.l.b16 %v403
        %v1107 = vunpack.c.h.b16 %v403
        %v1108 = vunpack.c.l.b16 %v404
        %v1109 = vunpack.c.h.b16 %v404
        %v1110 = vunpack.c.l.b16 %v405
        %v1111 = vunpack.c.h.b16 %v405
        %v1112 = vunpack.c.l.b16 %v406
        %v1113 = vunpack.c.h.b16 %v406
        %v1114 = vunpack.c.l.b16 %v407
        %v1115 = vunpack.c.h.b16 %v407
        %v1116 = vunpack.c.l.b16 %v408
        %v1117 = vunpack.c.h.b16 %v408
        %v1118 = vunpack.c.l.b16 %v409
        %v1119 = vunpack.c.h.b16 %v409
        %v1120 = vunpack.c.l.b16 %v410
        %v1121 = vunpack.c.h.b16 %v410
        %v1122 = vunpack.c.l.b16 %v411
        %v1123 = vunpack.c.h.b16 %v411
        %v1124 = vunpack.c.l.b16 %v412
        %v1125 = vunpack.c.h.b16 %v412
        %v1126 = vunpack.c.l.b16 %v413
        %v1127 = vunpack.c.h.b16 %v413
        %v1128 = vunpack.c.l.b16 %v414
        %v1129 = vunpack.c.h.b16 %v414
        %v1130 = vunpack.c.l.b16 %v415
        %v1131 = vunpack.c.h.b16 %v415
        %v1132 = vunpack.c.l.b16 %v416
        %v1133 = vunpack.c.h.b16 %v416
        %v1134 = vunpack.c.l.b16 %v417
        %v1135 = vunpack.c.h.b16 %v417
        %v1136 = vunpack.c.l.b16 %v418
        %v1137 = vunpack.c.h.b16 %v418
        %v1138 = vunpack.c.l.b16 %v419
        %v1139 = vunpack.c.h.b16 %v419
        %v1140 = vunpack.c.l.b16 %v420
        %v1141 = vunpack.c.h.b16 %v420
        %v1142 = vunpack.c.l.b16 %v421
        %v1143 = vunpack.c.h.b16 %v421
        %v1144 = vunpack.c.l.b16 %v422
        %v1145 = vunpack.c.h.b16 %v422
        %v1146 = vunpack.c.l.b16 %v423
        %v1147 = vunpack.c.h.b16 %v423
        %v1148 = vunpack.c.l.b16 %v424
        %v1149 = vunpack.c.h.b16 %v424
        %v1150 = vunpack.c.l.b16 %v425
        %v1151 = vunpack.c.h.b16 %v425
        %v1152 = vunpack.c.l.b16 %v426
        %v1153 = vunpack.c.h.b16 %v426
        %v1154 = vunpack.c.l.b16 %v427
        %v1155 = vunpack.c.h.b16 %v427
        %v1156 = vunpack.c.l.b16 %v428
        %v1157 = vunpack.c.h.b16 %v428
        %v1158 = vunpack.c.l.b16 %v429
        %v1159 = vunpack.c.h.b16 %v429
        %v1160 = vunpack.c.l.b16 %v430
        %v1161 = vunpack.c.h.b16 %v430
        %v1162 = vunpack.c.l.b16 %v431
        %v1163 = vunpack.c.h.b16 %v431
        %v1164 = vunpack.c.l.b16 %v432
        %v1165 = vunpack.c.h.b16 %v432
        %v1166 = vunpack.c.l.b16 %v433
        %v1167 = vunpack.c.h.b16 %v433
        %v1168 = vunpack.c.l.b16 %v434
        %v1169 = vunpack.c.h.b16 %v434
        %v1170 = vunpack.c.l.b16 %v435
        %v1171 = vunpack.c.h.b16 %v435
        %v1172 = vunpack.c.l.b16 %v436
        %v1173 = vunpack.c.h.b16 %v436
        %v1174 = vunpack.c.l.b16 %v437
        %v1175 = vunpack.c.h.b16 %v437
        %v1176 = vunpack.c.l.b16 %v438
        %v1177 = vunpack.c.h.b16 %v438
        %v1178 = vunpack.c.l.b16 %v439
        %v1179 = vunpack.c.h.b16 %v439
        %v1180 = vunpack.c.l.b16 %v440
        %v1181 = vunpack.c.h.b16 %v440
        %v1182 = vunpack.c.l.b16 %v441
        %v1183 = vunpack.c.h.b16 %v441
        %v1184 = vunpack.c.l.b16 %v442
        %v1185 = vunpack.c.h.b16 %v442
        %v1186 = vunpack.c.l.b16 %v443
        %v1187 = vunpack.c.h.b16 %v443
        %v1188 = vunpack.c.l.b16 %v444
        %v1189 = vunpack.c.h.b16 %v444
        %v1190 = vunpack.c.l.b16 %v445
        %v1191 = vunpack.c.h.b16 %v445
        %v1192 = vunpack.c.l.b16 %v446
        %v1193 = vunpack.c.h.b16 %v446
        %v1194 = vunpack.c.l.b16 %v447
        %v1195 = vunpack.c.h.b16 %v447
        %v1196 = vunpack.c.l.b16 %v448
        %v1197 = vunpack.c.h.b16 %v448
        %v1198 = vunpack.c.l.b16 %v449
        %v1199 = vunpack.c.h.b16 %v449
        %v1200 = vunpack.c.l.b16 %v450
        %v1201 = vunpack.c.h.b16 %v450
        %v1202 = vunpack.c.l.b16 %v451
        %v1203 = vunpack.c.h.b16 %v451
        %v1204 = vunpack.c.l.b16 %v452
        %v1205 = vunpack.c.h.b16 %v452
        %v1206 = vunpack.c.l.b16 %v453
        %v1207 = vunpack.c.h.b16 %v453
        %v1208 = vunpack.c.l.b16 %v454
        %v1209 = vunpack.c.h.b16 %v454
        %v1210 = vunpack.c.l.b16 %v455
        %v1211 = vunpack.c.h.b16 %v455
        %v1212 = vunpack.c.l.b16 %v456
        %v1213 = vunpack.c.h.b16 %v456
        %v1214 = vunpack.c.l.b16 %v457
        %v1215 = vunpack.c.h.b16 %v457
        %v1216 = vunpack.c.l.b16 %v458
        %v1217 = vunpack.c.h.b16 %v458
        %v1218 = vunpack.c.l.b16 %v459
        %v1219 = vunpack.c.h.b16 %v459
        %v1220 = vunpack.c.l.b16 %v460
        %v1221 = vunpack.c.h.b16 %v460
        %v1222 = vunpack.c.l.b16 %v461
        %v1223 = vunpack.c.h.b16 %v461
        %v1224 = vunpack.c.l.b16 %v462
        %v1225 = vunpack.c.h.b16 %v462
        %v1226 = vunpack.c.l.b16 %v463
        %v1227 = vunpack.c.h.b16 %v463
        %v1228 = vunpack.c.l.b16 %v464
        %v1229 = vunpack.c.h.b16 %v464
        %v1230 = vunpack.c.l.b16 %v465
        %v1231 = vunpack.c.h.b16 %v465
        %v1232 = vunpack.c.l.b16 %v466
        %v1233 = vunpack.c.h.b16 %v466
        %v1234 = vunpack.c.l.b16 %v467
        %v1235 = vunpack.c.h.b16 %v467
        %v1236 = vunpack.c.l.b16 %v468
        %v1237 = vunpack.c.h.b16 %v468
        %v1238 = vunpack.c.l.b16 %v469
        %v1239 = vunpack.c.h.b16 %v469
        %v1240 = vunpack.c.l.b16 %v470
        %v1241 = vunpack.c.h.b16 %v470
        %v1242 = vunpack.c.l.b16 %v471
        %v1243 = vunpack.c.h.b16 %v471
        %v1244 = vunpack.c.l.b16 %v472
        %v1245 = vunpack.c.h.b16 %v472
        %v1246 = vunpack.c.l.b16 %v473
        %v1247 = vunpack.c.h.b16 %v473
        %v1248 = vunpack.c.l.b16 %v474
        %v1249 = vunpack.c.h.b16 %v474
        %v1250 = vunpack.c.l.b16 %v475
        %v1251 = vunpack.c.h.b16 %v475
        %v1252 = vunpack.c.l.b16 %v476
        %v1253 = vunpack.c.h.b16 %v476
        %v1254 = vunpack.c.l.b16 %v477
        %v1255 = vunpack.c.h.b16 %v477
        %v1256 = vunpack.c.l.b16 %v478
        %v1257 = vunpack.c.h.b16 %v478
        %v1258 = vunpack.c.l.b16 %v479
        %v1259 = vunpack.c.h.b16 %v479
        %v1260 = vunpack.c.l.b16 %v480
        %v1261 = vunpack.c.h.b16 %v480
        %v1262 = vunpack.c.l.b16 %v481
        %v1263 = vunpack.c.h.b16 %v481
        %v1264 = vunpack.c.l.b16 %v482
        %v1265 = vunpack.c.h.b16 %v482
        %v1266 = vunpack.c.l.b16 %v483
        %v1267 = vunpack.c.h.b16 %v483
        %v1268 = vunpack.c.l.b16 %v484
        %v1269 = vunpack.c.h.b16 %v484
        %v1270 = vunpack.c.l.b16 %v485
        %v1271 = vunpack.c.h.b16 %v485
        %v1272 = vunpack.c.l.b16 %v486
        %v1273 = vunpack.c.h.b16 %v486
        %v1274 = vunpack.c.l.b16 %v487
        %v1275 = vunpack.c.h.b16 %v487
        %v1276 = vunpack.c.l.b16 %v488
        %v1277 = vunpack.c.h.b16 %v488
        %v1278 = vunpack.c.l.b16 %v489
        %v1279 = vunpack.c.h.b16 %v489
        %v1280 = vunpack.c.l.b16 %v490
        %v1281 = vunpack.c.h.b16 %v490
        %v1282 = vunpack.c.l.b16 %v491
        %v1283 = vunpack.c.h.b16 %v491
        %v1284 = vunpack.c.l.b16 %v492
        %v1285 = vunpack.c.h.b16 %v492
        %v1286 = vunpack.c.l.b16 %v493
        %v1287 = vunpack.c.h.b16 %v493
        %v1288 = vunpack.c.l.b16 %v494
        %v1289 = vunpack.c.h.b16 %v494
        %v1290 = vunpack.c.l.b16 %v495
        %v1291 = vunpack.c.h.b16 %v495
        %v1292 = vunpack.c.l.b16 %v496
        %v1293 = vunpack.c.h.b16 %v496
        %v1294 = vunpack.c.l.b16 %v497
        %v1295 = vunpack.c.h.b16 %v497
        %v1296 = vunpack.c.l.b16 %v498
        %v1297 = vunpack.c.h.b16 %v498
        %v1298 = vunpack.c.l.b16 %v499
        %v1299 = vunpack.c.h.b16 %v499
        %v1300 = vunpack.c.l.b16 %v500
        %v1301 = vunpack.c.h.b16 %v500
        %v1302 = vunpack.c.l.b16 %v501
        %v1303 = vunpack.c.h.b16 %v501
        %v1304 = vunpack.c.l.b16 %v502
        %v1305 = vunpack.c.h.b16 %v502
        %v1306 = vunpack.c.l.b16 %v503
        %v1307 = vunpack.c.h.b16 %v503
        %v1308 = vunpack.c.l.b16 %v504
        %v1309 = vunpack.c.h.b16 %v504
        %v1310 = vunpack.c.l.b16 %v505
        %v1311 = vunpack.c.h.b16 %v505
        %v1312 = vunpack.c.l.b16 %v506
        %v1313 = vunpack.c.h.b16 %v506
        %v1314 = vunpack.c.l.b16 %v507
        %v1315 = vunpack.c.h.b16 %v507
        %v1316 = vunpack.c.l.b16 %v508
        %v1317 = vunpack.c.h.b16 %v508
        %v1318 = vunpack.c.l.b16 %v509
        %v1319 = vunpack.c.h.b16 %v509
        %v1320 = vunpack.c.l.b16 %v510
        %v1321 = vunpack.c.h.b16 %v510
        %v1322 = vunpack.c.l.b16 %v511
        %v1323 = vunpack.c.h.b16 %v511
        %v1324 = vunpack.c.l.b16 %v512
        %v1325 = vunpack.c.h.b16 %v512
        %v1326 = vunpack.c.l.b16 %v513
        %v1327 = vunpack.c.h.b16 %v513
        %v1328 = vunpack.c.l.b16 %v514
        %v1329 = vunpack.c.h.b16 %v514
        %v1330 = vunpack.c.l.b16 %v515
        %v1331 = vunpack.c.h.b16 %v515
        %v1332 = vunpack.c.l.b16 %v516
        %v1333 = vunpack.c.h.b16 %v516
        %v1334 = vunpack.c.l.b16 %v517
        %v1335 = vunpack.c.h.b16 %v517
        %v1336 = vunpack.c.l.b16 %v518
        %v1337 = vunpack.c.h.b16 %v518
        %v1338 = vunpack.c.l.b16 %v519
        %v1339 = vunpack.c.h.b16 %v519
        %v1340 = vunpack.c.l.b16 %v520
        %v1341 = vunpack.c.h.b16 %v520
        %v1342 = vunpack.c.l.b16 %v521
        %v1343 = vunpack.c.h.b16 %v521
        %v1344 = vunpack.c.l.b16 %v522
        %v1345 = vunpack.c.h.b16 %v522
        %v1346 = vunpack.c.l.b16 %v523
        %v1347 = vunpack.c.h.b16 %v523
        %v1348 = vunpack.c.l.b16 %v524
        %v1349 = vunpack.c.h.b16 %v524
        %v1350 = vunpack.c.l.b16 %v525
        %v1351 = vunpack.c.h.b16 %v525
        %v1352 = vunpack.c.l.b16 %v526
        %v1353 = vunpack.c.h.b16 %v526
        %v1354 = vunpack.c.l.b16 %v527
        %v1355 = vunpack.c.h.b16 %v527
        %v1356 = vunpack.c.l.b16 %v528
        %v1357 = vunpack.c.h.b16 %v528
        %v1358 = vunpack.c.l.b16 %v529
        %v1359 = vunpack.c.h.b16 %v529
        %v1360 = vunpack.c.l.b16 %v530
        %v1361 = vunpack.c.h.b16 %v530
        %v1362 = vunpack.c.l.b16 %v531
        %v1363 = vunpack.c.h.b16 %v531
        %v1364 = vunpack.c.l.b16 %v532
        %v1365 = vunpack.c.h.b16 %v532
        %v1366 = vunpack.c.l.b16 %v533
        %v1367 = vunpack.c.h.b16 %v533
        %v1368 = vunpack.c.l.b16 %v534
        %v1369 = vunpack.c.h.b16 %v534
        %v1370 = vunpack.c.l.b16 %v535
        %v1371 = vunpack.c.h.b16 %v535
        %v1372 = vunpack.c.l.b16 %v536
        %v1373 = vunpack.c.h.b16 %v536
        %v1374 = vunpack.c.l.b16 %v537
        %v1375 = vunpack.c.h.b16 %v537
        %v1376 = vunpack.c.l.b16 %v538
        %v1377 = vunpack.c.h.b16 %v538
        %v1378 = vunpack.c.l.b16 %v539
        %v1379 = vunpack.c.h.b16 %v539
        %v1380 = vunpack.c.l.b16 %v540
        %v1381 = vunpack.c.h.b16 %v540
        %v1382 = vunpack.c.l.b16 %v541
        %v1383 = vunpack.c.h.b16 %v541
        %v1384 = vunpack.c.l.b16 %v542
        %v1385 = vunpack.c.h.b16 %v542
        %v1386 = vunpack.c.l.b16 %v543
        %v1387 = vunpack.c.h.b16 %v543
        %v1388 = vunpack.c.l.b16 %v544
        %v1389 = vunpack.c.h.b16 %v544
        %v1390 = vunpack.c.l.b16 %v545
        %v1391 = vunpack.c.h.b16 %v545
        %v1392 = vunpack.c.l.b16 %v546
        %v1393 = vunpack.c.h.b16 %v546
        %v1394 = vunpack.c.l.b16 %v547
        %v1395 = vunpack.c.h.b16 %v547
        %v1396 = vunpack.c.l.b16 %v548
        %v1397 = vunpack.c.h.b16 %v548
        %v1398 = vunpack.c.l.b16 %v549
        %v1399 = vunpack.c.h.b16 %v549
        %v1400 = vunpack.c.l.b16 %v550
        %v1401 = vunpack.c.h.b16 %v550
        %v1402 = vunpack.c.l.b16 %v551
        %v1403 = vunpack.c.h.b16 %v551
        %v1404 = vunpack.c.l.b16 %v552
        %v1405 = vunpack.c.h.b16 %v552
        %v1406 = vunpack.c.l.b16 %v553
        %v1407 = vunpack.c.h.b16 %v553
        %v1408 = vunpack.c.l.b16 %v554
        %v1409 = vunpack.c.h.b16 %v554
        %v1410 = vunpack.c.l.b16 %v555
        %v1411 = vunpack.c.h.b16 %v555
        %v1412 = vunpack.c.l.b16 %v556
        %v1413 = vunpack.c.h.b16 %v556
        %v1414 = vunpack.c.l.b16 %v557
        %v1415 = vunpack.c.h.b16 %v557
        %v1416 = vunpack.c.l.b16 %v558
        %v1417 = vunpack.c.h.b16 %v558
        %v1418 = vunpack.c.l.b16 %v559
        %v1419 = vunpack.c.h.b16 %v559
        %v1420 = vunpack.c.l.b16 %v560
        %v1421 = vunpack.c.h.b16 %v560
        %v1422 = vunpack.c.l.b16 %v561
        %v1423 = vunpack.c.h.b16 %v561
        %v1424 = vunpack.c.l.b16 %v562
        %v1425 = vunpack.c.h.b16 %v562
        %v1426 = vunpack.c.l.b16 %v563
        %v1427 = vunpack.c.h.b16 %v563
        %v1428 = vunpack.c.l.b16 %v564
        %v1429 = vunpack.c.h.b16 %v564
        %v1430 = vunpack.c.l.b16 %v565
        %v1431 = vunpack.c.h.b16 %v565
        %v1432 = vunpack.c.l.b16 %v566
        %v1433 = vunpack.c.h.b16 %v566
        %v1434 = vunpack.c.l.b16 %v567
        %v1435 = vunpack.c.h.b16 %v567
        %v1436 = vunpack.c.l.b16 %v568
        %v1437 = vunpack.c.h.b16 %v568
        %v1438 = vunpack.c.l.b16 %v569
        %v1439 = vunpack.c.h.b16 %v569
        %v1440 = vunpack.c.l.b16 %v570
        %v1441 = vunpack.c.h.b16 %v570
        %v1442 = vunpack.c.l.b16 %v571
        %v1443 = vunpack.c.h.b16 %v571
        %v1444 = vunpack.c.l.b16 %v572
        %v1445 = vunpack.c.h.b16 %v572
        %v1446 = vunpack.c.l.b16 %v573
        %v1447 = vunpack.c.h.b16 %v573
        %v1448 = vunpack.c.l.b16 %v574
        %v1449 = vunpack.c.h.b16 %v574
        %v1450 = vunpack.c.l.b16 %v575
        %v1451 = vunpack.c.h.b16 %v575
        %v1452 = vunpack.c.l.b16 %v576
        %v1453 = vunpack.c.h.b16 %v576
        %v1454 = vunpack.c.l.b16 %v577
        %v1455 = vunpack.c.h.b16 %v577
        %v1456 = vunpack.c.l.b16 %v578
        %v1457 = vunpack.c.h.b16 %v578
        %v1458 = vunpack.c.l.b16 %v579
        %v1459 = vunpack.c.h.b16 %v579
        %v1460 = vunpack.c.l.b16 %v580
        %v1461 = vunpack.c.h.b16 %v580
        %v1462 = vunpack.c.l.b16 %v581
        %v1463 = vunpack.c.h.b16 %v581
        %v1464 = vunpack.c.l.b16 %v582
        %v1465 = vunpack.c.h.b16 %v582
        %v1466 = vunpack.c.l.b16 %v583
        %v1467 = vunpack.c.h.b16 %v583
        %v1468 = vunpack.c.l.b16 %v584
        %v1469 = vunpack.c.h.b16 %v584
        %v1470 = vunpack.c.l.b16 %v585
        %v1471 = vunpack.c.h.b16 %v585
        %v1472 = vunpack.c.l.b16 %v586
        %v1473 = vunpack.c.h.b16 %v586
        %v1474 = vunpack.c.l.b16 %v587
        %v1475 = vunpack.c.h.b16 %v587
        %v1476 = vunpack.c.l.b16 %v588
        %v1477 = vunpack.c.h.b16 %v588
        %v1478 = vunpack.c.l.b16 %v589
        %v1479 = vunpack.c.h.b16 %v589
        %v1480 = vunpack.c.l.b16 %v590
        %v1481 = vunpack.c.h.b16 %v590
        %v1482 = vunpack.c.l.b16 %v591
        %v1483 = vunpack.c.h.b16 %v591
        %v1484 = vunpack.c.l.b16 %v592
        %v1485 = vunpack.c.h.b16 %v592
        %v1486 = vunpack.c.l.b16 %v593
        %v1487 = vunpack.c.h.b16 %v593
        %v1488 = vunpack.c.l.b16 %v594
        %v1489 = vunpack.c.h.b16 %v594
        %v1490 = vunpack.c.l.b16 %v595
        %v1491 = vunpack.c.h.b16 %v595
        %v1492 = vunpack.c.l.b16 %v596
        %v1493 = vunpack.c.h.b16 %v596
        %v1494 = vunpack.c.l.b16 %v597
        %v1495 = vunpack.c.h.b16 %v597
        %v1496 = vunpack.c.l.b16 %v598
        %v1497 = vunpack.c.h.b16 %v598
        %v1498 = vunpack.c.l.b16 %v599
        %v1499 = vunpack.c.h.b16 %v599
        %v1500 = vunpack.c.l.b16 %v600
        %v1501 = vunpack.c.h.b16 %v600
        %v1502 = vunpack.c.l.b16 %v601
        %v1503 = vunpack.c.h.b16 %v601
        %v1504 = vunpack.c.l.b16 %v602
        %v1505 = vunpack.c.h.b16 %v602
        %v1506 = vunpack.c.l.b16 %v603
        %v1507 = vunpack.c.h.b16 %v603
        %v1508 = vunpack.c.l.b16 %v604
        %v1509 = vunpack.c.h.b16 %v604
        %v1510 = vunpack.c.l.b16 %v605
        %v1511 = vunpack.c.h.b16 %v605
        %v1512 = vunpack.c.l.b16 %v606
        %v1513 = vunpack.c.h.b16 %v606
        %v1514 = vunpack.c.l.b16 %v607
        %v1515 = vunpack.c.h.b16 %v607
        %v1516 = vunpack.c.l.b16 %v608
        %v1517 = vunpack.c.h.b16 %v608
        %v1518 = vunpack.c.l.b16 %v609
        %v1519 = vunpack.c.h.b16 %v609
        %v1520 = vunpack.c.l.b16 %v610
        %v1521 = vunpack.c.h.b16 %v610
        %v1522 = vunpack.c.l.b16 %v611
        %v1523 = vunpack.c.h.b16 %v611
        %v1524 = vunpack.c.l.b16 %v612
        %v1525 = vunpack.c.h.b16 %v612
        %v1526 = vunpack.c.l.b16 %v613
        %v1527 = vunpack.c.h.b16 %v613
        %v1528 = vunpack.c.l.b16 %v614
        %v1529 = vunpack.c.h.b16 %v614
        %v1530 = vunpack.c.l.b16 %v615
        %v1531 = vunpack.c.h.b16 %v615
        %v1532 = vunpack.c.l.b16 %v616
        %v1533 = vunpack.c.h.b16 %v616
        %v1534 = vunpack.c.l.b16 %v617
        %v1535 = vunpack.c.h.b16 %v617
        %v1536 = vunpack.c.l.b16 %v618
        %v1537 = vunpack.c.h.b16 %v618
        %v1538 = vunpack.c.l.b16 %v619
        %v1539 = vunpack.c.h.b16 %v619
        %v1540 = vunpack.c.l.b16 %v620
        %v1541 = vunpack.c.h.b16 %v620
        %v1542 = vunpack.c.l.b16 %v621
        %v1543 = vunpack.c.h.b16 %v621
        %v1544 = vunpack.c.l.b16 %v622
        %v1545 = vunpack.c.h.b16 %v622
        %v1546 = vunpack.c.l.b16 %v623
        %v1547 = vunpack.c.h.b16 %v623
        %v1548 = vunpack.c.l.b16 %v624
        %v1549 = vunpack.c.h.b16 %v624
        %v1550 = vunpack.c.l.b16 %v625
        %v1551 = vunpack.c.h.b16 %v625
        %v1552 = vunpack.c.l.b16 %v626
        %v1553 = vunpack.c.h.b16 %v626
        %v1554 = vunpack.c.l.b16 %v627
        %v1555 = vunpack.c.h.b16 %v627
        %v1556 = vunpack.c.l.b16 %v628
        %v1557 = vunpack.c.h.b16 %v628
        %v1558 = vunpack.c.l.b16 %v629
        %v1559 = vunpack.c.h.b16 %v629
        %v1560 = vunpack.c.l.b16 %v630
        %v1561 = vunpack.c.h.b16 %v630
        %v1562 = vunpack.c.l.b16 %v631
        %v1563 = vunpack.c.h.b16 %v631
        %v1564 = vunpack.c.l.b16 %v632
        %v1565 = vunpack.c.h.b16 %v632
        %v1566 = vunpack.c.l.b16 %v633
        %v1567 = vunpack.c.h.b16 %v633
        %v1568 = vunpack.c.l.b16 %v634
        %v1569 = vunpack.c.h.b16 %v634
        %v1570 = vunpack.c.l.b16 %v635
        %v1571 = vunpack.c.h.b16 %v635
        %v1572 = vunpack.c.l.b16 %v636
        %v1573 = vunpack.c.h.b16 %v636
        %v1574 = vunpack.c.l.b16 %v637
        %v1575 = vunpack.c.h.b16 %v637
        %v1576 = vunpack.c.l.b16 %v638
        %v1577 = vunpack.c.h.b16 %v638
        %v1578 = vunpack.c.l.b16 %v639
        %v1579 = vunpack.c.h.b16 %v639
        %v1580 = vunpack.c.l.b16 %v640
        %v1581 = vunpack.c.h.b16 %v640
        %v1582 = vunpack.c.l.b16 %v641
        %v1583 = vunpack.c.h.b16 %v641
        %v1584 = vunpack.c.l.b16 %v642
        %v1585 = vunpack.c.h.b16 %v642
        %v1586 = vunpack.c.l.b16 %v643
        %v1587 = vunpack.c.h.b16 %v643
        %v1588 = vunpack.c.l.b16 %v644
        %v1589 = vunpack.c.h.b16 %v644
        %v1590 = vunpack.c.l.b16 %v645
        %v1591 = vunpack.c.h.b16 %v645
        %v1592 = vunpack.c.l.b16 %v646
        %v1593 = vunpack.c.h.b16 %v646
        %v1594 = vunpack.c.l.b16 %v647
        %v1595 = vunpack.c.h.b16 %v647
        %v1596 = vunpack.c.l.b16 %v648
        %v1597 = vunpack.c.h.b16 %v648
        %v1598 = vunpack.c.l.b16 %v649
        %v1599 = vunpack.c.h.b16 %v649
        %v1600 = vpack.c.b16 %v1030, %v1024
        %v1601 = vpack.c.b16 %v1031, %v1025
        %v1602 = vpack.c.b16 %v1032, %v1026
        %v1603 = vpack.c.b16 %v1033, %v1027
        %v1604 = vpack.c.b16 %v1034, %v1028
        %v1605 = vpack.c.b16 %v1035, %v1029
        %v1606 = vpack.c.b16 %v1042, %v1036
        %v1607 = vpack.c.b16 %v1043, %v1037
        %v1608 = vpack.c.b16 %v1044, %v1038
        %v1609 = vpack.c.b16 %v1045, %v1039
        %v1610 = vpack.c.b16 %v1046, %v1040
        %v1611 = vpack.c.b16 %v1047, %v1041
        %v1612 = vpack.c.b16 %v1054, %v1048
        %v1613 = vpack.c.b16 %v1055, %v1049
        %v1614 = vpack.c.b16 %v1056, %v1050
        %v1615 = vpack.c.b16 %v1057, %v1051
        %v1616 = vpack.c.b16 %v1058, %v1052
        %v1617 = vpack.c.b16 %v1059, %v1053
        %v1618 = vpack.c.b16 %v1066, %v1060
        %v1619 = vpack.c.b16 %v1067, %v1061
        %v1620 = vpack.c.b16 %v1068, %v1062
        %v1621 = vpack.c.b16 %v1069, %v1063
        %v1622 = vpack.c.b16 %v1070, %v1064
        %v1623 = vpack.c.b16 %v1071, %v1065
        %v1624 = vpack.c.b16 %v1078, %v1072
        %v1625 = vpack.c.b16 %v1079, %v1073
        %v1626 = vpack.c.b16 %v1080, %v1074
        %v1627 = vpack.c.b16 %v1081, %v1075
        %v1628 = vpack.c.b16 %v1082, %v1076
        %v1629 = vpack.c.b16 %v1083, %v1077
        %v1630 = vpack.c.b16 %v1090, %v1084
        %v1631 = vpack.c.b16 %v1091, %v1085
        %v1632 = vpack.c.b16 %v1092, %v1086
        %v1633 = vpack.c.b16 %v1093, %v1087
        %v1634 = vpack.c.b16 %v1094, %v1088
        %v1635 = vpack.c.b16 %v1095, %v1089
        %v1636 = vpack.c.b16 %v1102, %v1096
        %v1637 = vpack.c.b16 %v1103, %v1097
        %v1638 = vpack.c.b16 %v1104, %v1098
        %v1639 = vpack.c.b16 %v1105, %v1099
        %v1640 = vpack.c.b16 %v1106, %v1100
        %v1641 = vpack.c.b16 %v1107, %v1101
        %v1642 = vpack.c.b16 %v1114, %v1108
        %v1643 = vpack.c.b16 %v1115, %v1109
        %v1644 = vpack.c.b16 %v1116, %v1110
        %v1645 = vpack.c.b16 %v1117, %v1111
        %v1646 = vpack.c.b16 %v1118, %v1112
        %v1647 = vpack.c.b16 %v1119, %v1113
        %v1648 = vpack.c.b16 %v1126, %v1120
        %v1649 = vpack.c.b16 %v1127, %v1121
        %v1650 = vpack.c.b16 %v1128, %v1122
        %v1651 = vpack.c.b16 %v1129, %v1123
        %v1652 = vpack.c.b16 %v1130, %v1124
        %v1653 = vpack.c.b16 %v1131, %v1125
        %v1654 = vpack.c.b16 %v1138, %v1132
        %v1655 = vpack.c.b16 %v1139, %v1133
        %v1656 = vpack.c.b16 %v1140, %v1134
        %v1657 = vpack.c.b16 %v1141, %v1135
        %v1658 = vpack.c.b16 %v1142, %v1136
        %v1659 = vpack.c.b16 %v1143, %v1137
        %v1660 = vpack.c.b16 %v1150, %v1144
        %v1661 = vpack.c.b16 %v1151, %v1145
        %v1662 = vpack.c.b16 %v1152, %v1146
        %v1663 = vpack.c.b16 %v1153, %v1147
        %v1664 = vpack.c.b16 %v1154, %v1148
        %v1665 = vpack.c.b16 %v1155, %v1149
        %v1666 = vpack.c.b16 %v1162, %v1156
        %v1667 = vpack.c.b16 %v1163, %v1157
        %v1668 = vpack.c.b16 %v1164, %v1158
        %v1669 = vpack.c.b16 %v1165, %v1159
        %v1670 = vpack.c.b16 %v1166, %v1160
        %v1671 = vpack.c.b16 %v1167, %v1161
        %v1672 = vpack.c.b16 %v1174, %v1168
        %v1673 = vpack.c.b16 %v1175, %v1169
        %v1674 = vpack.c.b16 %v1176, %v1170
        %v1675 = vpack.c.b16 %v1177, %v1171
        %v1676 = vpack.c.b16 %v1178, %v1172
        %v1677 = vpack.c.b16 %v1179, %v1173
        %v1678 = vpack.c.b16 %v1186, %v1180
        %v1679 = vpack.c.b16 %v1187, %v1181
        %v1680 = vpack.c.b16 %v1188, %v1182
        %v1681 = vpack.c.b16 %v1189, %v1183
        %v1682 = vpack.c.b16 %v1190, %v1184
        %v1683 = vpack.c.b16 %v1191, %v1185
        %v1684 = vpack.c.b16 %v1198, %v1192
        %v1685 = vpack.c.b16 %v1199, %v1193
        %v1686 = vpack.c.b16 %v1200, %v1194
        %v1687 = vpack.c.b16 %v1201, %v1195
        %v1688 = vpack.c.b16 %v1202, %v1196
        %v1689 = vpack.c.b16 %v1203, %v1197
        %v1690 = vpack.c.b16 %v1210, %v1204
        %v1691 = vpack.c.b16 %v1211, %v1205
        %v1692 = vpack.c.b16 %v1212, %v1206
        %v1693 = vpack.c.b16 %v1213, %v1207
        %v1694 = vpack.c.b16 %v1214, %v1208
        %v1695 = vpack.c.b16 %v1215, %v1209
        %v1696 = vpack.c.b16 %v1222, %v1216
        %v1697 = vpack.c.b16 %v1223, %v1217
        %v1698 = vpack.c.b16 %v1224, %v1218
        %v1699 = vpack.c.b16 %v1225, %v1219
        %v1700 = vpack.c.b16 %v1226, %v1220
        %v1701 = vpack.c.b16 %v1227, %v1221
        %v1702 = vpack.c.b16 %v1234, %v1228
        %v1703 = vpack.c.b16 %v1235, %v1229
        %v1704 = vpack.c.b16 %v1236, %v1230
        %v1705 = vpack.c.b16 %v1237, %v1231
        %v1706 = vpack.c.b16 %v1238, %v1232
        %v1707 = vpack.c.b16 %v1239, %v1233
        %v1708 = vpack.c.b16 %v1246, %v1240
        %v1709 = vpack.c.b16 %v1247, %v1241
        %v1710 = vpack.c.b16 %v1248, %v1242
        %v1711 = vpack.c.b16 %v1249, %v1243
        %v1712 = vpack.c.b16 %v1250, %v1244
        %v1713 = vpack.c.b16 %v1251, %v1245
        %v1714 = vpack.c.b16 %v1258, %v1252
        %v1715 = vpack.c.b16 %v1259, %v1253
        %v1716 = vpack.c.b16 %v1260, %v1254
        %v1717 = vpack.c.b16 %v1261, %v1255
        %v1718 = vpack.c.b16 %v1262, %v1256
        %v1719 = vpack.c.b16 %v1263, %v1257
        %v1720 = vpack.c.b16 %v1270, %v1264
        %v1721 = vpack.c.b16 %v1271, %v1265
        %v1722 = vpack.c.b16 %v1272, %v1266
        %v1723 = vpack.c.b16 %v1273, %v1267
        %v1724 = vpack.c.b16 %v1274, %v1268
        %v1725 = vpack.c.b16 %v1275, %v1269
        %v1726 = vpack.c.b16 %v1282, %v1276
        %v1727 = vpack.c.b16 %v1283, %v1277
        %v1728 = vpack.c.b16 %v1284, %v1278
        %v1729 = vpack.c.b16 %v1285, %v1279
        %v1730 = vpack.c.b16 %v1286, %v1280
        %v1731 = vpack.c.b16 %v1287, %v1281
        %v1732 = vpack.c.b16 %v1294, %v1288
        %v1733 = vpack.c.b16 %v1295, %v1289
        %v1734 = vpack.c.b16 %v1296, %v1290
        %v1735 = vpack.c.b16 %v1297, %v1291
        %v1736 = vpack.c.b16 %v1298, %v1292
        %v1737 = vpack.c.b16 %v1299, %v1293
        %v1738 = vpack.c.b16 %v1306, %v1300
        %v1739 = vpack.c.b16 %v1307, %v1301
        %v1740 = vpack.c.b16 %v1308, %v1302
        %v1741 = vpack.c.b16 %v1309, %v1303
        %v1742 = vpack.c.b16 %v1310, %v1304
        %v1743 = vpack.c.b16 %v1311, %v1305
        %v1744 = vpack.c.b16 %v1318, %v1312
        %v1745 = vpack.c.b16 %v1319, %v1313
        %v1746 = vpack.c.b16 %v1320, %v1314
        %v1747 = vpack.c.b16 %v1321, %v1315
        %v1748 = vpack.c.b16 %v1322, %v1316
        %v1749 = vpack.c.b16 %v1323, %v1317
        %v1750 = vpack.c.b16 %v1330, %v1324
        %v1751 = vpack.c.b16 %v1331, %v1325
        %v1752 = vpack.c.b16 %v1332, %v1326
        %v1753 = vpack.c.b16 %v1333, %v1327
        %v1754 = vpack.c.b16 %v1334, %v1328
        %v1755 = vpack.c.b16 %v1335, %v1329
        %v1756 = vpack.c.b16 %v1342, %v1336
        %v1757 = vpack.c.b16 %v1343, %v1337
        %v1758 = vpack.c.b16 %v1344, %v1338
        %v1759 = vpack.c.b16 %v1345, %v1339
        %v1760 = vpack.c.b16 %v1346, %v1340
        %v1761 = vpack.c.b16 %v1347, %v1341
        %v1762 = vpack.c.b16 %v1354, %v1348
        %v1763 = vpack.c.b16 %v1355, %v1349
        %v1764 = vpack.c.b16 %v1356, %v1350
        %v1765 = vpack.c.b16 %v1357, %v1351
        %v1766 = vpack.c.b16 %v1358, %v1352
        %v1767 = vpack.c.b16 %v1359, %v1353
        %v1768 = vpack.c.b16 %v1366, %v1360
        %v1769 = vpack.c.b16 %v1367, %v1361
        %v1770 = vpack.c.b16 %v1368, %v1362
        %v1771 = vpack.c.b16 %v1369, %v1363
        %v1772 = vpack.c.b16 %v1370, %v1364
        %v1773 = vpack.c.b16 %v1371, %v1365
        %v1774 = vpack.c.b16 %v1378, %v1372
        %v1775 = vpack.c.b16 %v1379, %v1373
        %v1776 = vpack.c.b16 %v1380, %v1374
        %v1777 = vpack.c.b16 %v1381, %v1375
        %v1778 = vpack.c.b16 %v1382, %v1376
        %v1779 = vpack.c.b16 %v1383, %v1377
        %v1780 = vpack.c.b16 %v1390, %v1384
        %v1781 = vpack.c.b16 %v1391, %v1385
        %v1782 = vpack.c.b16 %v1392, %v1386
        %v1783 = vpack.c.b16 %v1393, %v1387
        %v1784 = vpack.c.b16 %v1394, %v1388
        %v1785 = vpack.c.b16 %v1395, %v1389
        %v1786 = vpack.c.b16 %v1402, %v1396
        %v1787 = vpack.c.b16 %v1403, %v1397
        %v1788 = vpack.c.b16 %v1404, %v1398
        %v1789 = vpack.c.b16 %v1405, %v1399
        %v1790 = vpack.c.b16 %v1406, %v1400
        %v1791 = vpack.c.b16 %v1407, %v1401
        %v1792 = vpack.c.b16 %v1414, %v1408
        %v1793 = vpack.c.b16 %v1415, %v1409
        %v1794 = vpack.c.b16 %v1416, %v1410
        %v1795 = vpack.c.b16 %v1417, %v1411
        %v1796 = vpack.c.b16 %v1418, %v1412
        %v1797 = vpack.c.b16 %v1419, %v1413
        %v1798 = vpack.c.b16 %v1426, %v1420
        %v1799 = vpack.c.b16 %v1427, %v1421
        %v1800 = vpack.c.b16 %v1428, %v1422
        %v1801 = vpack.c.b16 %v1429, %v1423
        %v1802 = vpack.c.b16 %v1430, %v1424
        %v1803 = vpack.c.b16 %v1431, %v1425
        %v1804 = vpack.c.b16 %v1438, %v1432
        %v1805 = vpack.c.b16 %v1439, %v1433
        %v1806 = vpack.c.b16 %v1440, %v1434
        %v1807 = vpack.c.b16 %v1441, %v1435
        %v1808 = vpack.c.b16 %v1442, %v1436
        %v1809 = vpack.c.b16 %v1443, %v1437
        %v1810 = vpack.c.b16 %v1450, %v1444
        %v1811 = vpack.c.b16 %v1451, %v1445
        %v1812 = vpack.c.b16 %v1452, %v1446
        %v1813 = vpack.c.b16 %v1453, %v1447
        %v1814 = vpack.c.b16 %v1454, %v1448
        %v1815 = vpack.c.b16 %v1455, %v1449
        %v1816 = vpack.c.b16 %v1462, %v1456
        %v1817 = vpack.c.b16 %v1463, %v1457
        %v1818 = vpack.c.b16 %v1464, %v1458
        %v1819 = vpack.c.b16 %v1465, %v1459
        %v1820 = vpack.c.b16 %v1466, %v1460
        %v1821 = vpack.c.b16 %v1467, %v1461
        %v1822 = vpack.c.b16 %v1474, %v1468
        %v1823 = vpack.c.b16 %v1475, %v1469
        %v1824 = vpack.c.b16 %v1476, %v1470
        %v1825 = vpack.c.b16 %v1477, %v1471
        %v1826 = vpack.c.b16 %v1478, %v1472
        %v1827 = vpack.c.b16 %v1479, %v1473
        %v1828 = vpack.c.b16 %v1486, %v1480
        %v1829 = vpack.c.b16 %v1487, %v1481
        %v1830 = vpack.c.b16 %v1488, %v1482
        %v1831 = vpack.c.b16 %v1489, %v1483
        %v1832 = vpack.c.b16 %v1490, %v1484
        %v1833 = vpack.c.b16 %v1491, %v1485
        %v1834 = vpack.c.b16 %v1498, %v1492
        %v1835 = vpack.c.b16 %v1499, %v1493
        %v1836 = vpack.c.b16 %v1500, %v1494
        %v1837 = vpack.c.b16 %v1501, %v1495
        %v1838 = vpack.c.b16 %v1502, %v1496
        %v1839 = vpack.c.b16 %v1503, %v1497
        %v1840 = vpack.c.b16 %v1510, %v1504
        %v1841 = vpack.c.b16 %v1511, %v1505
        %v1842 = vpack.c.b16 %v1512, %v1506
        %v1843 = vpack.c.b16 %v1513, %v1507
        %v1844 = vpack.c.b16 %v1514, %v1508
        %v1845 = vpack.c.b16 %v1515, %v1509
        %v1846 = vpack.c.b16 %v1522, %v1516
        %v1847 = vpack.c.b16 %v1523, %v1517
        %v1848 = vpack.c.b16 %v1524, %v1518
        %v1849 = vpack.c.b16 %v1525, %v1519
        %v1850 = vpack.c.b16 %v1526, %v1520
        %v1851 = vpack.c.b16 %v1527, %v1521
        %v1852 = vpack.c.b16 %v1534, %v1528
        %v1853 = vpack.c.b16 %v1535, %v1529
        %v1854 = vpack.c.b16 %v1536, %v1530
        %v1855 = vpack.c.b16 %v1537, %v1531
        %v1856 = vpack.c.b16 %v1538, %v1532
        %v1857 = vpack.c.b16 %v1539, %v1533
        %v1858 = vpack.c.b16 %v1546, %v1540
        %v1859 = vpack.c.b16 %v1547, %v1541
        %v1860 = vpack.c.b16 %v1548, %v1542
        %v1861 = vpack.c.b16 %v1549, %v1543
        %v1862 = vpack.c.b16 %v1550, %v1544
        %v1863 = vpack.c.b16 %v1551, %v1545
        %v1864 = vpack.c.b16 %v1558, %v1552
        %v1865 = vpack.c.b16 %v1559, %v1553
        %v1866 = vpack.c.b16 %v1560, %v1554
        %v1867 = vpack.c.b16 %v1561, %v1555
        %v1868 = vpack.c.b16 %v1562, %v1556
        %v1869 = vpack.c.b16 %v1563, %v1557
        %v1870 = vpack.c.b16 %v1570, %v1564
        %v1871 = vpack.c.b16 %v1571, %v1565
        %v1872 = vpack.c.b16 %v1572, %v1566
        %v1873 = vpack.c.b16 %v1573, %v1567
        %v1874 = vpack.c.b16 %v1574, %v1568
        %v1875 = vpack.c.b16 %v1575, %v1569
        %v1876 = vpack.c.b16 %v1582, %v1576
        %v1877 = vpack.c.b16 %v1583, %v1577
        %v1878 = vpack.c.b16 %v1584, %v1578
        %v1879 = vpack.c.b16 %v1585, %v1579
        %v1880 = vpack.c.b16 %v1586, %v1580
        %v1881 = vpack.c.b16 %v1587, %v1581
        %v1882 = vpack.c.b16 %v1594, %v1588
        %v1883 = vpack.c.b16 %v1595, %v1589
        %v1884 = vpack.c.b16 %v1596, %v1590
        %v1885 = vpack.c.b16 %v1597, %v1591
        %v1886 = vpack.c.b16 %v1598, %v1592
        %v1887 = vpack.c.b16 %v1599, %v1593
        %2176 = vmatprep.subr.bf16.mxu0 %v1601
        %2177 = vmatpush1.bf16.msra.mxu0 %v1600
        %2178 = vmatprep.subr.bf16.mxu0 %v1607
        %2179 = vmatpush1.bf16.msra.mxu0 %v1606
        %2180 = vmatprep.subr.bf16.mxu0 %v1613
        %2181 = vmatpush1.bf16.msra.mxu0 %v1612
        %2182 = vmatprep.subr.bf16.mxu0 %v1619
        %2183 = vmatpush1.bf16.msra.mxu0 %v1618
        %2184 = vmatprep.subr.bf16.mxu0 %v1625
        %2185 = vmatpush1.bf16.msra.mxu0 %v1624
        %2186 = vmatprep.subr.bf16.mxu0 %v1631
        %2187 = vmatpush1.bf16.msra.mxu0 %v1630
        %2188 = vmatprep.subr.bf16.mxu0 %v1637
        %2189 = vmatpush1.bf16.msra.mxu0 %v1636
        %2190 = vmatprep.subr.bf16.mxu0 %v1643
        %2191 = vmatpush1.bf16.msra.mxu0 %v1642
        %2192 = vmatprep.subr.bf16.mxu0 %v1649
        %2193 = vmatpush1.bf16.msra.mxu0 %v1648
        %2194 = vmatprep.subr.bf16.mxu0 %v1655
        %2195 = vmatpush1.bf16.msra.mxu0 %v1654
        %2196 = vmatprep.subr.bf16.mxu0 %v1661
        %2197 = vmatpush1.bf16.msra.mxu0 %v1660
        %2198 = vmatprep.subr.bf16.mxu0 %v1667
        %2199 = vmatpush1.bf16.msra.mxu0 %v1666
        %2200 = vmatprep.subr.bf16.mxu0 %v1673
        %2201 = vmatpush1.bf16.msra.mxu0 %v1672
        %2202 = vmatprep.subr.bf16.mxu0 %v1679
        %2203 = vmatpush1.bf16.msra.mxu0 %v1678
        %2204 = vmatprep.subr.bf16.mxu0 %v1685
        %2205 = vmatpush1.bf16.msra.mxu0 %v1684
        %2206 = vmatprep.subr.bf16.mxu0 %v1691
        %2207 = vmatpush1.bf16.msra.mxu0 %v1690
        %2208 = vmatprep.mubr.bf16.mxu0 %v720
        %2209 = vmatmul.mubr.bf16.gmra.mrb[0].mxu0 %v706
        %v2210 = vpop.f32.mrb[0].mxu0
        %v2211 = vadd.f32 %v655, %v2210
        %v2212 = vpop.f32.mrb[0].mxu0
        %v2213 = vadd.f32 %v659, %v2212
        %v2214 = vpop.f32.mrb[0].mxu0
        %v2215 = vpop.f32.mrb[0].mxu0
        %2216 = vdwg.mxu0
        %2217 = vmatprep.subr.bf16.mxu0 %v1697
        %2218 = vmatpush1.bf16.msra.mxu0 %v1696
        %2219 = vmatprep.subr.bf16.mxu0 %v1703
        %2220 = vmatpush1.bf16.msra.mxu0 %v1702
        %2221 = vmatprep.subr.bf16.mxu0 %v1709
        %2222 = vmatpush1.bf16.msra.mxu0 %v1708
        %2223 = vmatprep.subr.bf16.mxu0 %v1715
        %2224 = vmatpush1.bf16.msra.mxu0 %v1714
        %2225 = vmatprep.subr.bf16.mxu0 %v1721
        %2226 = vmatpush1.bf16.msra.mxu0 %v1720
        %2227 = vmatprep.subr.bf16.mxu0 %v1727
        %2228 = vmatpush1.bf16.msra.mxu0 %v1726
        %2229 = vmatprep.subr.bf16.mxu0 %v1733
        %2230 = vmatpush1.bf16.msra.mxu0 %v1732
        %2231 = vmatprep.subr.bf16.mxu0 %v1739
        %2232 = vmatpush1.bf16.msra.mxu0 %v1738
        %2233 = vmatprep.subr.bf16.mxu0 %v1745
        %2234 = vmatpush1.bf16.msra.mxu0 %v1744
        %2235 = vmatprep.subr.bf16.mxu0 %v1751
        %2236 = vmatpush1.bf16.msra.mxu0 %v1750
        %2237 = vmatprep.subr.bf16.mxu0 %v1757
        %2238 = vmatpush1.bf16.msra.mxu0 %v1756
        %2239 = vmatprep.subr.bf16.mxu0 %v1763
        %2240 = vmatpush1.bf16.msra.mxu0 %v1762
        %2241 = vmatprep.subr.bf16.mxu0 %v1769
        %2242 = vmatpush1.bf16.msra.mxu0 %v1768
        %2243 = vmatprep.subr.bf16.mxu0 %v1775
        %2244 = vmatpush1.bf16.msra.mxu0 %v1774
        %2245 = vmatprep.subr.bf16.mxu0 %v1781
        %2246 = vmatpush1.bf16.msra.mxu0 %v1780
        %2247 = vmatprep.subr.bf16.mxu0 %v1787
        %2248 = vmatpush1.bf16.msra.mxu0 %v1786
        %2249 = vmatprep.mubr.bf16.mxu0 %v729
        %2250 = vmatmul.mubr.bf16.gmra.mrb[0].mxu0 %v728
        %v2251 = vpop.f32.mrb[0].mxu0
        %v2252 = vadd.f32 %v2211, %v2251
        %v2253 = vpop.f32.mrb[0].mxu0
        %v2254 = vadd.f32 %v2213, %v2253
        %v2255 = vpop.f32.mrb[0].mxu0
        %v2256 = vpop.f32.mrb[0].mxu0
        %2257 = vdwg.mxu0
        %2258 = vmatprep.subr.bf16.mxu0 %v1793
        %2259 = vmatpush1.bf16.msra.mxu0 %v1792
        %2260 = vmatprep.subr.bf16.mxu0 %v1799
        %2261 = vmatpush1.bf16.msra.mxu0 %v1798
        %2262 = vmatprep.subr.bf16.mxu0 %v1805
        %2263 = vmatpush1.bf16.msra.mxu0 %v1804
        %2264 = vmatprep.subr.bf16.mxu0 %v1811
        %2265 = vmatpush1.bf16.msra.mxu0 %v1810
        %2266 = vmatprep.subr.bf16.mxu0 %v1817
        %2267 = vmatpush1.bf16.msra.mxu0 %v1816
        %2268 = vmatprep.subr.bf16.mxu0 %v1823
        %2269 = vmatpush1.bf16.msra.mxu0 %v1822
        %2270 = vmatprep.subr.bf16.mxu0 %v1829
        %2271 = vmatpush1.bf16.msra.mxu0 %v1828
        %2272 = vmatprep.subr.bf16.mxu0 %v1835
        %2273 = vmatpush1.bf16.msra.mxu0 %v1834
        %2274 = vmatprep.subr.bf16.mxu0 %v1841
        %2275 = vmatpush1.bf16.msra.mxu0 %v1840
        %2276 = vmatprep.subr.bf16.mxu0 %v1847
        %2277 = vmatpush1.bf16.msra.mxu0 %v1846
        %2278 = vmatprep.subr.bf16.mxu0 %v1853
        %2279 = vmatpush1.bf16.msra.mxu0 %v1852
        %2280 = vmatprep.subr.bf16.mxu0 %v1859
        %2281 = vmatpush1.bf16.msra.mxu0 %v1858
        %2282 = vmatprep.subr.bf16.mxu0 %v1865
        %2283 = vmatpush1.bf16.msra.mxu0 %v1864
        %2284 = vmatprep.subr.bf16.mxu0 %v1871
        %2285 = vmatpush1.bf16.msra.mxu0 %v1870
        %2286 = vmatprep.subr.bf16.mxu0 %v1877
        %2287 = vmatpush1.bf16.msra.mxu0 %v1876
        %2288 = vmatprep.subr.bf16.mxu0 %v1883
        %2289 = vmatpush1.bf16.msra.mxu0 %v1882
        %2290 = vmatprep.mubr.bf16.mxu0 %v727
        %2291 = vmatmul.mubr.bf16.gmra.mrb[0].mxu0 %v713
        %v2292 = vpop.f32.mrb[0].mxu0
        %v2293 = vadd.f32 %v2252, %v2292
        %v2294 = vpop.f32.mrb[0].mxu0
        %v2295 = vadd.f32 %v2254, %v2294
        %v2296 = vpop.f32.mrb[0].mxu0
        %v2297 = vpop.f32.mrb[0].mxu0
        %2298 = vdwg.mxu0
        %2299 = vmatprep.subr.bf16.mxu0 %v1603
        %2300 = vmatpush1.bf16.msra.mxu0 %v1602
        %2301 = vmatprep.subr.bf16.mxu0 %v1609
        %2302 = vmatpush1.bf16.msra.mxu0 %v1608
        %2303 = vmatprep.subr.bf16.mxu0 %v1615
        %2304 = vmatpush1.bf16.msra.mxu0 %v1614
        %2305 = vmatprep.subr.bf16.mxu0 %v1621
        %2306 = vmatpush1.bf16.msra.mxu0 %v1620
        %2307 = vmatprep.subr.bf16.mxu0 %v1627
        %2308 = vmatpush1.bf16.msra.mxu0 %v1626
        %2309 = vmatprep.subr.bf16.mxu0 %v1633
        %2310 = vmatpush1.bf16.msra.mxu0 %v1632
        %2311 = vmatprep.subr.bf16.mxu0 %v1639
        %2312 = vmatpush1.bf16.msra.mxu0 %v1638
        %2313 = vmatprep.subr.bf16.mxu0 %v1645
        %2314 = vmatpush1.bf16.msra.mxu0 %v1644
        %2315 = vmatprep.subr.bf16.mxu0 %v1651
        %2316 = vmatpush1.bf16.msra.mxu0 %v1650
        %2317 = vmatprep.subr.bf16.mxu0 %v1657
        %2318 = vmatpush1.bf16.msra.mxu0 %v1656
        %2319 = vmatprep.subr.bf16.mxu0 %v1663
        %2320 = vmatpush1.bf16.msra.mxu0 %v1662
        %2321 = vmatprep.subr.bf16.mxu0 %v1669
        %2322 = vmatpush1.bf16.msra.mxu0 %v1668
        %2323 = vmatprep.subr.bf16.mxu0 %v1675
        %2324 = vmatpush1.bf16.msra.mxu0 %v1674
        %2325 = vmatprep.subr.bf16.mxu0 %v1681
        %2326 = vmatpush1.bf16.msra.mxu0 %v1680
        %2327 = vmatprep.subr.bf16.mxu0 %v1687
        %2328 = vmatpush1.bf16.msra.mxu0 %v1686
        %2329 = vmatprep.subr.bf16.mxu0 %v1693
        %2330 = vmatpush1.bf16.msra.mxu0 %v1692
        %2331 = vmatprep.mubr.bf16.mxu0 %v720
        %2332 = vmatmul.mubr.bf16.gmra.mrb[0].mxu0 %v706
        %v2333 = vpop.f32.mrb[0].mxu0
        %v2334 = vadd.f32 %v663, %v2333
        %v2335 = vpop.f32.mrb[0].mxu0
        %v2336 = vadd.f32 %v667, %v2335
        %v2337 = vpop.f32.mrb[0].mxu0
        %v2338 = vpop.f32.mrb[0].mxu0
        %2339 = vdwg.mxu0
        %2340 = vmatprep.subr.bf16.mxu0 %v1699
        %2341 = vmatpush1.bf16.msra.mxu0 %v1698
        %2342 = vmatprep.subr.bf16.mxu0 %v1705
        %2343 = vmatpush1.bf16.msra.mxu0 %v1704
        %2344 = vmatprep.subr.bf16.mxu0 %v1711
        %2345 = vmatpush1.bf16.msra.mxu0 %v1710
        %2346 = vmatprep.subr.bf16.mxu0 %v1717
        %2347 = vmatpush1.bf16.msra.mxu0 %v1716
        %2348 = vmatprep.subr.bf16.mxu0 %v1723
        %2349 = vmatpush1.bf16.msra.mxu0 %v1722
        %2350 = vmatprep.subr.bf16.mxu0 %v1729
        %2351 = vmatpush1.bf16.msra.mxu0 %v1728
        %2352 = vmatprep.subr.bf16.mxu0 %v1735
        %2353 = vmatpush1.bf16.msra.mxu0 %v1734
        %2354 = vmatprep.subr.bf16.mxu0 %v1741
        %2355 = vmatpush1.bf16.msra.mxu0 %v1740
        %2356 = vmatprep.subr.bf16.mxu0 %v1747
        %2357 = vmatpush1.bf16.msra.mxu0 %v1746
        %2358 = vmatprep.subr.bf16.mxu0 %v1753
        %2359 = vmatpush1.bf16.msra.mxu0 %v1752
        %2360 = vmatprep.subr.bf16.mxu0 %v1759
        %2361 = vmatpush1.bf16.msra.mxu0 %v1758
        %2362 = vmatprep.subr.bf16.mxu0 %v1765
        %2363 = vmatpush1.bf16.msra.mxu0 %v1764
        %2364 = vmatprep.subr.bf16.mxu0 %v1771
        %2365 = vmatpush1.bf16.msra.mxu0 %v1770
        %2366 = vmatprep.subr.bf16.mxu0 %v1777
        %2367 = vmatpush1.bf16.msra.mxu0 %v1776
        %2368 = vmatprep.subr.bf16.mxu0 %v1783
        %2369 = vmatpush1.bf16.msra.mxu0 %v1782
        %2370 = vmatprep.subr.bf16.mxu0 %v1789
        %2371 = vmatpush1.bf16.msra.mxu0 %v1788
        %2372 = vmatprep.mubr.bf16.mxu0 %v729
        %2373 = vmatmul.mubr.bf16.gmra.mrb[0].mxu0 %v728
        %v2374 = vpop.f32.mrb[0].mxu0
        %v2375 = vadd.f32 %v2334, %v2374
        %v2376 = vpop.f32.mrb[0].mxu0
        %v2377 = vadd.f32 %v2336, %v2376
        %v2378 = vpop.f32.mrb[0].mxu0
        %v2379 = vpop.f32.mrb[0].mxu0
        %2380 = vdwg.mxu0
        %2381 = vmatprep.subr.bf16.mxu0 %v1795
        %2382 = vmatpush1.bf16.msra.mxu0 %v1794
        %2383 = vmatprep.subr.bf16.mxu0 %v1801
        %2384 = vmatpush1.bf16.msra.mxu0 %v1800
        %2385 = vmatprep.subr.bf16.mxu0 %v1807
        %2386 = vmatpush1.bf16.msra.mxu0 %v1806
        %2387 = vmatprep.subr.bf16.mxu0 %v1813
        %2388 = vmatpush1.bf16.msra.mxu0 %v1812
        %2389 = vmatprep.subr.bf16.mxu0 %v1819
        %2390 = vmatpush1.bf16.msra.mxu0 %v1818
        %2391 = vmatprep.subr.bf16.mxu0 %v1825
        %2392 = vmatpush1.bf16.msra.mxu0 %v1824
        %2393 = vmatprep.subr.bf16.mxu0 %v1831
        %2394 = vmatpush1.bf16.msra.mxu0 %v1830
        %2395 = vmatprep.subr.bf16.mxu0 %v1837
        %2396 = vmatpush1.bf16.msra.mxu0 %v1836
        %2397 = vmatprep.subr.bf16.mxu0 %v1843
        %2398 = vmatpush1.bf16.msra.mxu0 %v1842
        %2399 = vmatprep.subr.bf16.mxu0 %v1849
        %2400 = vmatpush1.bf16.msra.mxu0 %v1848
        %2401 = vmatprep.subr.bf16.mxu0 %v1855
        %2402 = vmatpush1.bf16.msra.mxu0 %v1854
        %2403 = vmatprep.subr.bf16.mxu0 %v1861
        %2404 = vmatpush1.bf16.msra.mxu0 %v1860
        %2405 = vmatprep.subr.bf16.mxu0 %v1867
        %2406 = vmatpush1.bf16.msra.mxu0 %v1866
        %2407 = vmatprep.subr.bf16.mxu0 %v1873
        %2408 = vmatpush1.bf16.msra.mxu0 %v1872
        %2409 = vmatprep.subr.bf16.mxu0 %v1879
        %2410 = vmatpush1.bf16.msra.mxu0 %v1878
        %2411 = vmatprep.subr.bf16.mxu0 %v1885
        %2412 = vmatpush1.bf16.msra.mxu0 %v1884
        %2413 = vmatprep.mubr.bf16.mxu0 %v727
        %2414 = vmatmul.mubr.bf16.gmra.mrb[0].mxu0 %v713
        %v2415 = vpop.f32.mrb[0].mxu0
        %v2416 = vadd.f32 %v2375, %v2415
        %v2417 = vpop.f32.mrb[0].mxu0
        %v2418 = vadd.f32 %v2377, %v2417
        %v2419 = vpop.f32.mrb[0].mxu0
        %v2420 = vpop.f32.mrb[0].mxu0
        %2421 = vdwg.mxu0
        %2422 = vmatprep.subr.bf16.mxu0 %v1605
        %2423 = vmatpush1.bf16.msra.mxu0 %v1604
        %2424 = vmatprep.subr.bf16.mxu0 %v1611
        %2425 = vmatpush1.bf16.msra.mxu0 %v1610
        %2426 = vmatprep.subr.bf16.mxu0 %v1617
        %2427 = vmatpush1.bf16.msra.mxu0 %v1616
        %2428 = vmatprep.subr.bf16.mxu0 %v1623
        %2429 = vmatpush1.bf16.msra.mxu0 %v1622
        %2430 = vmatprep.subr.bf16.mxu0 %v1629
        %2431 = vmatpush1.bf16.msra.mxu0 %v1628
        %2432 = vmatprep.subr.bf16.mxu0 %v1635
        %2433 = vmatpush1.bf16.msra.mxu0 %v1634
        %2434 = vmatprep.subr.bf16.mxu0 %v1641
        %2435 = vmatpush1.bf16.msra.mxu0 %v1640
        %2436 = vmatprep.subr.bf16.mxu0 %v1647
        %2437 = vmatpush1.bf16.msra.mxu0 %v1646
        %2438 = vmatprep.subr.bf16.mxu0 %v1653
        %2439 = vmatpush1.bf16.msra.mxu0 %v1652
        %2440 = vmatprep.subr.bf16.mxu0 %v1659
        %2441 = vmatpush1.bf16.msra.mxu0 %v1658
        %2442 = vmatprep.subr.bf16.mxu0 %v1665
        %2443 = vmatpush1.bf16.msra.mxu0 %v1664
        %2444 = vmatprep.subr.bf16.mxu0 %v1671
        %2445 = vmatpush1.bf16.msra.mxu0 %v1670
        %2446 = vmatprep.subr.bf16.mxu0 %v1677
        %2447 = vmatpush1.bf16.msra.mxu0 %v1676
        %2448 = vmatprep.subr.bf16.mxu0 %v1683
        %2449 = vmatpush1.bf16.msra.mxu0 %v1682
        %2450 = vmatprep.subr.bf16.mxu0 %v1689
        %2451 = vmatpush1.bf16.msra.mxu0 %v1688
        %2452 = vmatprep.subr.bf16.mxu0 %v1695
        %2453 = vmatpush1.bf16.msra.mxu0 %v1694
        %2454 = vmatprep.mubr.bf16.mxu0 %v720
        %2455 = vmatmul.mubr.bf16.gmra.mrb[0].mxu0 %v706
        %v2456 = vpop.f32.mrb[0].mxu0
        %v2457 = vadd.f32 %v671, %v2456
        %v2458 = vpop.f32.mrb[0].mxu0
        %v2459 = vadd.f32 %v675, %v2458
        %v2460 = vpop.f32.mrb[0].mxu0
        %v2461 = vpop.f32.mrb[0].mxu0
        %2462 = vdwg.mxu0
        %2463 = vmatprep.subr.bf16.mxu0 %v1701
        %2464 = vmatpush1.bf16.msra.mxu0 %v1700
        %2465 = vmatprep.subr.bf16.mxu0 %v1707
        %2466 = vmatpush1.bf16.msra.mxu0 %v1706
        %2467 = vmatprep.subr.bf16.mxu0 %v1713
        %2468 = vmatpush1.bf16.msra.mxu0 %v1712
        %2469 = vmatprep.subr.bf16.mxu0 %v1719
        %2470 = vmatpush1.bf16.msra.mxu0 %v1718
        %2471 = vmatprep.subr.bf16.mxu0 %v1725
        %2472 = vmatpush1.bf16.msra.mxu0 %v1724
        %2473 = vmatprep.subr.bf16.mxu0 %v1731
        %2474 = vmatpush1.bf16.msra.mxu0 %v1730
        %2475 = vmatprep.subr.bf16.mxu0 %v1737
        %2476 = vmatpush1.bf16.msra.mxu0 %v1736
        %2477 = vmatprep.subr.bf16.mxu0 %v1743
        %2478 = vmatpush1.bf16.msra.mxu0 %v1742
        %2479 = vmatprep.subr.bf16.mxu0 %v1749
        %2480 = vmatpush1.bf16.msra.mxu0 %v1748
        %2481 = vmatprep.subr.bf16.mxu0 %v1755
        %2482 = vmatpush1.bf16.msra.mxu0 %v1754
        %2483 = vmatprep.subr.bf16.mxu0 %v1761
        %2484 = vmatpush1.bf16.msra.mxu0 %v1760
        %2485 = vmatprep.subr.bf16.mxu0 %v1767
        %2486 = vmatpush1.bf16.msra.mxu0 %v1766
        %2487 = vmatprep.subr.bf16.mxu0 %v1773
        %2488 = vmatpush1.bf16.msra.mxu0 %v1772
        %2489 = vmatprep.subr.bf16.mxu0 %v1779
        %2490 = vmatpush1.bf16.msra.mxu0 %v1778
        %2491 = vmatprep.subr.bf16.mxu0 %v1785
        %2492 = vmatpush1.bf16.msra.mxu0 %v1784
        %2493 = vmatprep.subr.bf16.mxu0 %v1791
        %2494 = vmatpush1.bf16.msra.mxu0 %v1790
        %2495 = vmatprep.mubr.bf16.mxu0 %v729
        %2496 = vmatmul.mubr.bf16.gmra.mrb[0].mxu0 %v728
        %v2497 = vpop.f32.mrb[0].mxu0
        %v2498 = vadd.f32 %v2457, %v2497
        %v2499 = vpop.f32.mrb[0].mxu0
        %v2500 = vadd.f32 %v2459, %v2499
        %v2501 = vpop.f32.mrb[0].mxu0
        %v2502 = vpop.f32.mrb[0].mxu0
        %2503 = vdwg.mxu0
        %2504 = vmatprep.subr.bf16.mxu0 %v1797
        %2505 = vmatpush1.bf16.msra.mxu0 %v1796
        %2506 = vmatprep.subr.bf16.mxu0 %v1803
        %2507 = vmatpush1.bf16.msra.mxu0 %v1802
        %2508 = vmatprep.subr.bf16.mxu0 %v1809
        %2509 = vmatpush1.bf16.msra.mxu0 %v1808
        %2510 = vmatprep.subr.bf16.mxu0 %v1815
        %2511 = vmatpush1.bf16.msra.mxu0 %v1814
        %2512 = vmatprep.subr.bf16.mxu0 %v1821
        %2513 = vmatpush1.bf16.msra.mxu0 %v1820
        %2514 = vmatprep.subr.bf16.mxu0 %v1827
        %2515 = vmatpush1.bf16.msra.mxu0 %v1826
        %2516 = vmatprep.subr.bf16.mxu0 %v1833
        %2517 = vmatpush1.bf16.msra.mxu0 %v1832
        %2518 = vmatprep.subr.bf16.mxu0 %v1839
        %2519 = vmatpush1.bf16.msra.mxu0 %v1838
        %2520 = vmatprep.subr.bf16.mxu0 %v1845
        %2521 = vmatpush1.bf16.msra.mxu0 %v1844
        %2522 = vmatprep.subr.bf16.mxu0 %v1851
        %2523 = vmatpush1.bf16.msra.mxu0 %v1850
        %2524 = vmatprep.subr.bf16.mxu0 %v1857
        %2525 = vmatpush1.bf16.msra.mxu0 %v1856
        %2526 = vmatprep.subr.bf16.mxu0 %v1863
        %2527 = vmatpush1.bf16.msra.mxu0 %v1862
        %2528 = vmatprep.subr.bf16.mxu0 %v1869
        %2529 = vmatpush1.bf16.msra.mxu0 %v1868
        %2530 = vmatprep.subr.bf16.mxu0 %v1875
        %2531 = vmatpush1.bf16.msra.mxu0 %v1874
        %2532 = vmatprep.subr.bf16.mxu0 %v1881
        %2533 = vmatpush1.bf16.msra.mxu0 %v1880
        %2534 = vmatprep.subr.bf16.mxu0 %v1887
        %2535 = vmatpush1.bf16.msra.mxu0 %v1886
        %2536 = vmatprep.mubr.bf16.mxu0 %v727
        %2537 = vmatmul.mubr.bf16.gmra.mrb[0].mxu0 %v713
        %v2538 = vpop.f32.mrb[0].mxu0
        %v2539 = vadd.f32 %v2498, %v2538
        %v2540 = vpop.f32.mrb[0].mxu0
        %v2541 = vadd.f32 %v2500, %v2540
        %v2542 = vpop.f32.mrb[0].mxu0
        %v2543 = vpop.f32.mrb[0].mxu0
        %2544 = vdwg.mxu0
        %v2545 = vmax.f32 %v2293, 0.0
        %v2546 = vmax.f32 %v2295, 0.0
        %v2547 = vmax.f32 %v2416, 0.0
        %v2548 = vmax.f32 %v2418, 0.0
        %v2549 = vmax.f32 %v2539, 0.0
        %v2550 = vmax.f32 %v2541, 0.0
        %v2551 = vpack.c.bf16 %v2545, %v2545
        %v2552 = vpack.c.bf16 %v2546, %v2546
        %v2553 = vpack.c.bf16 %v2547, %v2547
        %v2554 = vpack.c.bf16 %v2548, %v2548
        %v2555 = vpack.c.bf16 %v2549, %v2549
        %v2556 = vpack.c.bf16 %v2550, %v2550
        %v2557 = vld [vmem:[%s311] sm:$0xff]
        %v2558 = vld [vmem:[%s311 + $0x8] sm:$0xf]
        %v2559 = vld [vmem:[%s319] sm:$0x1]
        %v2561 = vlaneseq
        %v2562 = vshrl.u32 %v2561, 7
        %v2563 = vsub.s32 0, %v2562
        %v2564 = vrot.slane %v2559, %v2563
        %v2568 = vcombine.high %v2557, %v2557
        %v2570 = vunpack.c.l.s4 1983009808
        %v2571 = vunpack.c.0.s8 %v2570
        %v2572 = vlaneseq
        %v2573 = vshrl.u32 %v2572, 7
        %v2574 = vsub.s32 %v2571, %v2573
        %v2575 = vrot.slane %v2557, %v2574
        %v2577 = vunpack.c.l.s4 1983009808
        %v2578 = vunpack.c.0.s8 %v2577
        %v2579 = vlaneseq
        %v2580 = vshrl.u32 %v2579, 7
        %v2581 = vsub.s32 %v2578, %v2580
        %v2582 = vrot.slane %v2568, %v2581
        %v2583 = vcombine.high %v2575, %v2575
        %v2584 = vcombine.high %v2582, %v2582
        %v2586 = vunpack.c.l.s4 1983009808
        %v2587 = vunpack.c.0.s8 %v2586
        %v2588 = vlaneseq
        %v2589 = vshrl.u32 %v2588, 7
        %v2590 = vsub.s32 %v2587, %v2589
        %v2591 = vrot.slane %v2558, %v2590
        %v2592 = vcombine.high %v2591, %v2591
        %2599 = vmatprep.subr.bf16.mxu0 %v2583
        %2600 = vmatpush1.bf16.xpose.msra.mxu0 %v2575
        %2601 = vmatprep.subr.bf16.mxu0 0
        %2602 = vmatpush1.bf16.xpose.msra.mxu0 0
        %2603 = vmatprep.subr.bf16.mxu0 0
        %2604 = vmatpush1.bf16.xpose.msra.mxu0 0
        %2605 = vmatprep.subr.bf16.mxu0 0
        %2606 = vmatpush1.bf16.xpose.msra.mxu0 0
        %2607 = vmatprep.subr.bf16.mxu0 0
        %2608 = vmatpush1.bf16.xpose.msra.mxu0 0
        %2609 = vmatprep.subr.bf16.mxu0 0
        %2610 = vmatpush1.bf16.xpose.msra.mxu0 0
        %2611 = vmatprep.subr.bf16.mxu0 0
        %2612 = vmatpush1.bf16.xpose.msra.mxu0 0
        %2613 = vmatprep.subr.bf16.mxu0 0
        %2614 = vmatpush1.bf16.xpose.msra.mxu0 0
        %2615 = vmatprep.subr.bf16.mxu0 0
        %2616 = vmatpush1.bf16.xpose.msra.mxu0 0
        %2617 = vmatprep.subr.bf16.mxu0 0
        %2618 = vmatpush1.bf16.xpose.msra.mxu0 0
        %2619 = vmatprep.subr.bf16.mxu0 0
        %2620 = vmatpush1.bf16.xpose.msra.mxu0 0
        %2621 = vmatprep.subr.bf16.mxu0 0
        %2622 = vmatpush1.bf16.xpose.msra.mxu0 0
        %2623 = vmatprep.subr.bf16.mxu0 0
        %2624 = vmatpush1.bf16.xpose.msra.mxu0 0
        %2625 = vmatprep.subr.bf16.mxu0 0
        %2626 = vmatpush1.bf16.xpose.msra.mxu0 0
        %2627 = vmatprep.subr.bf16.mxu0 0
        %2628 = vmatpush1.bf16.xpose.msra.mxu0 0
        %2629 = vmatprep.subr.bf16.mxu0 0
        %2630 = vmatpush1.bf16.xpose.msra.mxu0 0
        %2631 = vmatprep.mubr.bf16.mxu0 %v2552
        %2632 = vmatmul.mubr.bf16.gmra.mrb[0].mxu0 %v2551
        %v2633 = vpop.f32.mrb[0].mxu0
        %v2634 = vadd.f32 %v2564, %v2633
        %v2635 = vpop.f32.mrb[0].mxu0
        %v2636 = vpop.f32.mrb[0].mxu0
        %v2637 = vpop.f32.mrb[0].mxu0
        %2638 = vdwg.mxu0
        %2639 = vmatprep.subr.bf16.mxu0 %v2584
        %2640 = vmatpush1.bf16.xpose.msra.mxu0 %v2582
        %2641 = vmatprep.subr.bf16.mxu0 0
        %2642 = vmatpush1.bf16.xpose.msra.mxu0 0
        %2643 = vmatprep.subr.bf16.mxu0 0
        %2644 = vmatpush1.bf16.xpose.msra.mxu0 0
        %2645 = vmatprep.subr.bf16.mxu0 0
        %2646 = vmatpush1.bf16.xpose.msra.mxu0 0
        %2647 = vmatprep.subr.bf16.mxu0 0
        %2648 = vmatpush1.bf16.xpose.msra.mxu0 0
        %2649 = vmatprep.subr.bf16.mxu0 0
        %2650 = vmatpush1.bf16.xpose.msra.mxu0 0
        %2651 = vmatprep.subr.bf16.mxu0 0
        %2652 = vmatpush1.bf16.xpose.msra.mxu0 0
        %2653 = vmatprep.subr.bf16.mxu0 0
        %2654 = vmatpush1.bf16.xpose.msra.mxu0 0
        %2655 = vmatprep.subr.bf16.mxu0 0
        %2656 = vmatpush1.bf16.xpose.msra.mxu0 0
        %2657 = vmatprep.subr.bf16.mxu0 0
        %2658 = vmatpush1.bf16.xpose.msra.mxu0 0
        %2659 = vmatprep.subr.bf16.mxu0 0
        %2660 = vmatpush1.bf16.xpose.msra.mxu0 0
        %2661 = vmatprep.subr.bf16.mxu0 0
        %2662 = vmatpush1.bf16.xpose.msra.mxu0 0
        %2663 = vmatprep.subr.bf16.mxu0 0
        %2664 = vmatpush1.bf16.xpose.msra.mxu0 0
        %2665 = vmatprep.subr.bf16.mxu0 0
        %2666 = vmatpush1.bf16.xpose.msra.mxu0 0
        %2667 = vmatprep.subr.bf16.mxu0 0
        %2668 = vmatpush1.bf16.xpose.msra.mxu0 0
        %2669 = vmatprep.subr.bf16.mxu0 0
        %2670 = vmatpush1.bf16.xpose.msra.mxu0 0
        %2671 = vmatprep.mubr.bf16.mxu0 %v2554
        %2672 = vmatmul.mubr.bf16.gmra.mrb[0].mxu0 %v2553
        %v2673 = vpop.f32.mrb[0].mxu0
        %v2674 = vadd.f32 %v2634, %v2673
        %v2675 = vpop.f32.mrb[0].mxu0
        %v2676 = vpop.f32.mrb[0].mxu0
        %v2677 = vpop.f32.mrb[0].mxu0
        %2678 = vdwg.mxu0
        %2679 = vmatprep.subr.bf16.mxu0 %v2592
        %2680 = vmatpush1.bf16.xpose.msra.mxu0 %v2591
        %2681 = vmatprep.subr.bf16.mxu0 0
        %2682 = vmatpush1.bf16.xpose.msra.mxu0 0
        %2683 = vmatprep.subr.bf16.mxu0 0
        %2684 = vmatpush1.bf16.xpose.msra.mxu0 0
        %2685 = vmatprep.subr.bf16.mxu0 0
        %2686 = vmatpush1.bf16.xpose.msra.mxu0 0
        %2687 = vmatprep.subr.bf16.mxu0 0
        %2688 = vmatpush1.bf16.xpose.msra.mxu0 0
        %2689 = vmatprep.subr.bf16.mxu0 0
        %2690 = vmatpush1.bf16.xpose.msra.mxu0 0
        %2691 = vmatprep.subr.bf16.mxu0 0
        %2692 = vmatpush1.bf16.xpose.msra.mxu0 0
        %2693 = vmatprep.subr.bf16.mxu0 0
        %2694 = vmatpush1.bf16.xpose.msra.mxu0 0
        %2695 = vmatprep.subr.bf16.mxu0 0
        %2696 = vmatpush1.bf16.xpose.msra.mxu0 0
        %2697 = vmatprep.subr.bf16.mxu0 0
        %2698 = vmatpush1.bf16.xpose.msra.mxu0 0
        %2699 = vmatprep.subr.bf16.mxu0 0
        %2700 = vmatpush1.bf16.xpose.msra.mxu0 0
        %2701 = vmatprep.subr.bf16.mxu0 0
        %2702 = vmatpush1.bf16.xpose.msra.mxu0 0
        %2703 = vmatprep.subr.bf16.mxu0 0
        %2704 = vmatpush1.bf16.xpose.msra.mxu0 0
        %2705 = vmatprep.subr.bf16.mxu0 0
        %2706 = vmatpush1.bf16.xpose.msra.mxu0 0
        %2707 = vmatprep.subr.bf16.mxu0 0
        %2708 = vmatpush1.bf16.xpose.msra.mxu0 0
        %2709 = vmatprep.subr.bf16.mxu0 0
        %2710 = vmatpush1.bf16.xpose.msra.mxu0 0
        %2711 = vmatprep.mubr.bf16.mxu0 %v2556
        %2712 = vmatmul.mubr.bf16.gmra.mrb[0].mxu0 %v2555
        %v2713 = vpop.f32.mrb[0].mxu0
        %v2714 = vadd.f32 %v2674, %v2713
        %v2715 = vpop.f32.mrb[0].mxu0
        %v2716 = vpop.f32.mrb[0].mxu0
        %v2717 = vpop.f32.mrb[0].mxu0
        %2718 = vdwg.mxu0
        %vm2719 = vcmask 25600
        %2720 = vst.msk [vmem:[%s359] sm:$0x3] %vm2719, %v2714
        %s2721 = sand.u32 %s159, 1
        %s2722 = scalar_lea.sflag [#allocation4], %s2721
        %s2723 = sand.u32 %s159, 1
        %s2724 = smul.addr %s2723, 2
        %s2725 = scalar_lea.vmem [#allocation11], %s2724
        // Predicated region
        $region61: #{tpu_custom_call.1} parent=39 // pred_check
          %p2726 = pneg %p169
        $region62: #{tpu_custom_call.1} parent=39 // pred_check_branch
          %2728 = sbr.rel (%p2726) target = $region64
        $region63: #{tpu_custom_call.1} parent=39 // pred_region
          %s2730 = ssub.s32 32, 32
          %2731 = vsyncadd %s2722, %s2730
          %s2732 = smul.addr %s26, 32
          %s2733 = scalar_lea.hbm %s5, %s2732
          %s2735 = sshll.u32 %s2725, 4
          %s2736 = int_to_ptr.vmem [resolvable:$true] %s2735
          %2738 = dma.vmem_to_hbm [thread:$0]  %s2736, 32, %s2733, %s2722
        $region64: #{tpu_custom_call.1} parent=39 // pred_fallthru
          _
      $region40: #{tpu_custom_call.1} parent=5 // pred_fallthru
        _
      %p2739 = scmp.le.s32.totalorder 2, %s21
      // Predicated region
      $region65: #{tpu_custom_call.1} parent=5 // pred_check
        %p2740 = pneg %p2739
      $region66: #{tpu_custom_call.1} parent=5 // pred_check_branch
        %2742 = sbr.rel (%p2740) target = $region68
      $region67: #{tpu_custom_call.1} parent=5 // pred_region
        %s2743 = ssub.s32 %s21, 2
        // Predicated region
        $region69: #{tpu_custom_call.1} parent=67 // pred_check
          %p2744 = pneg %p175
        $region70: #{tpu_custom_call.1} parent=67 // pred_check_branch
          %2746 = sbr.rel (%p2744) target = $region72
        $region71: #{tpu_custom_call.1} parent=67 // pred_region
          %s2747 = sand.u32 %s160, 1
          %s2748 = scalar_lea.sflag [#allocation4], %s2747
          %s2749 = sand.u32 %s160, 1
          %s2750 = smul.addr %s2749, 2
          %s2751 = scalar_lea.vmem [#allocation11], %s2750
          %2752 = dma.done %s2748, 32
        $region72: #{tpu_custom_call.1} parent=67 // pred_fallthru
          _
      $region68: #{tpu_custom_call.1} parent=5 // pred_fallthru
        _
    $region6: #{tpu_custom_call.1} parent=1 // loop_footer
      %s25 = sadd.s32 1, %s21
    $region7: #{tpu_custom_call.1} parent=1 // loop_footer_branch
      %20 = sbr.rel target = $region3
    $region8: #{tpu_custom_call.1} parent=1 // loop_exit
      _
    %2753 = vsyncpa [#allocation3], 1
    %s2754 = scalar_lea.sflag [#allocation3], 1
    %2755 = vsyncpa %s2754, 1
    %2756 = vsyncpa [#allocation6], 1
    %s2757 = scalar_lea.sflag [#allocation6], 1
    %2758 = vsyncpa %s2757, 1
    %2759 = vsyncpa [#allocation9], 1
    %s2760 = scalar_lea.sflag [#allocation9], 1
    %2761 = vsyncpa %s2760, 1
    %2762 = vsyncpa [#allocation4], 1
    %s2763 = scalar_lea.sflag [#allocation4], 1
    %2764 = vsyncpa %s2763, 1

</llo_original>
